<compile_context>
chip_gen: v5e
topology: v5e:2x2
jax: 0.10.0
libtpu: 0.0.40
codegen_flags: <defaults>
</compile_context>

<pallas_src>
from functools import partial

import jax
import jax.numpy as jnp
from jax import lax
from jax.experimental import pallas as pl
from jax.experimental.pallas import tpu as pltpu


# ----------------------------------------------------------------------------
# Fused kernel: QKV projection + asymmetric masked attention + output projection
# ----------------------------------------------------------------------------
def _fused_attn_kernel(x_ref, wqkv_ref, wproj_ref, b_ref, o_ref, *,
                       num_heads, n_t):
    N, C = x_ref.shape[1], x_ref.shape[2]
    Dh = C // num_heads

    x = x_ref[0]                                                    # (N, C)

    # One fused QKV matmul: (N, C) @ (C, 3C). Columns are [q | k | v],
    # head-major within each third; attention scale already folded into q cols.
    qkv = jnp.dot(x, wqkv_ref[...], preferred_element_type=jnp.float32)

    # Additive mask: template rows (i < n_t) may only attend to template cols.
    # Search rows (i >= n_t) attend to everything.  Hoisted out of the head loop.
    row = lax.broadcasted_iota(jnp.int32, (N, N), 0)
    col = lax.broadcasted_iota(jnp.int32, (N, N), 1)
    neg = jnp.where(jnp.logical_or(row >= n_t, col < n_t),
                    0.0, -1e30).astype(jnp.float32)                 # (N, N)

    acc = jnp.zeros((N, C), jnp.float32)
    for h in range(num_heads):                                      # static unroll
        qh = qkv[:, h * Dh:(h + 1) * Dh]                            # (N, Dh)
        kh = qkv[:, C + h * Dh:C + (h + 1) * Dh]                    # (N, Dh)
        vh = qkv[:, 2 * C + h * Dh:2 * C + (h + 1) * Dh]            # (N, Dh)

        # single merged (N, N) masked score matrix per head
        s = lax.dot_general(qh, kh, (((1,), (1,)), ((), ())),
                            preferred_element_type=jnp.float32) + neg
        m = jnp.max(s, axis=-1, keepdims=True)
        e = jnp.exp(s - m)
        p = e * pl.reciprocal(jnp.sum(e, axis=-1, keepdims=True), approx=False)

        o_h = jnp.dot(p, vh, preferred_element_type=jnp.float32)    # (N, Dh)

        # fused output projection: accumulate this head's channel slice of
        # x_cat @ W_proj^T  (rows h*Dh:(h+1)*Dh of W_proj^T belong to head h)
        acc = acc + jnp.dot(o_h, wproj_ref[h * Dh:(h + 1) * Dh, :],
                            preferred_element_type=jnp.float32)

    # One lane-dense (N, C) store per batch element.
    o_ref[0] = (acc + b_ref[...]).astype(o_ref.dtype)


# ----------------------------------------------------------------------------
# One-time weight preprocessing (hoisted out of the forward path)
# ----------------------------------------------------------------------------
def prepare_attention_params(w_qkv, w_proj, b_proj, *, num_heads):
    """PyTorch nn.Linear weights are (out_features, in_features); precompute
    the transposed layouts once and fold the attention scale into the q part."""
    _, C = w_qkv.shape
    Dh = C // num_heads
    scale = Dh ** (-0.5)
    w_qkv_t = jnp.transpose(w_qkv)                     # (C, 3C): cols = [q|k|v]
    w_qkv_t = w_qkv_t.at[:, :C].multiply(scale)        # fold scale into q cols
    w_proj_t = jnp.transpose(w_proj)                   # (C, C)
    return w_qkv_t, w_proj_t, b_proj.reshape(1, C)


# ----------------------------------------------------------------------------
# Forward wrapper: single pallas_call, grid over batch only
# ----------------------------------------------------------------------------
@partial(jax.jit, static_argnames=("num_heads", "t_h", "t_w", "s_h", "s_w"))
def attention_forward(x, w_qkv_t, w_proj_t, b_proj, *,
                      num_heads, t_h, t_w, s_h, s_w):
    B, N, C = x.shape
    n_t = t_h * t_w
    n_s = s_h * s_w
    assert N == n_t + n_s
    assert C % num_heads == 0

    # TODO(synk): for realistic token counts (hundreds+ per region) this should
    # switch to a flash-style query-tiled online softmax and set
    # vmem_limit_bytes explicitly (v7x has 64 MiB VMEM).
    kernel = partial(_fused_attn_kernel, num_heads=num_heads, n_t=n_t)

    return pl.pallas_call(
        kernel,
        out_shape=jax.ShapeDtypeStruct((B, N, C), x.dtype),
        grid=(B,),
        in_specs=[
            pl.BlockSpec((1, N, C), lambda b: (b, 0, 0)),      # x
            pl.BlockSpec((C, 3 * C), lambda b: (0, 0)),        # W_qkv^T (scaled q)
            pl.BlockSpec((C, C), lambda b: (0, 0)),            # W_proj^T
            pl.BlockSpec((1, C), lambda b: (0, 0)),            # b_proj
        ],
        out_specs=pl.BlockSpec((1, N, C), lambda b: (b, 0, 0)),
        compiler_params=pltpu.CompilerParams(
            dimension_semantics=("parallel",)),                 # B>=2 keeps both v7x TCs busy
    )(x, w_qkv_t, w_proj_t, b_proj)


# ----------------------------------------------------------------------------
# Pure-JAX reference (mirrors the PyTorch forward)
# ----------------------------------------------------------------------------
def _reference(x, w_qkv, w_proj, b_proj, num_heads, n_t):
    B, N, C = x.shape
    H = num_heads
    Dh = C // H
    scale = Dh ** (-0.5)
    qkv = (x @ w_qkv.T).reshape(B, N, 3, H, Dh).transpose(2, 0, 3, 1, 4)
    q, k, v = qkv[0], qkv[1], qkv[2]              # (B, H, N, Dh)
    q_mt, q_s = q[:, :, :n_t], q[:, :, n_t:]
    k_mt, v_mt = k[:, :, :n_t], v[:, :, :n_t]
    a1 = jax.nn.softmax(q_mt @ jnp.swapaxes(k_mt, -2, -1) * scale, axis=-1)
    x_mt = (a1 @ v_mt).transpose(0, 2, 1, 3).reshape(B, n_t, C)
    a2 = jax.nn.softmax(q_s @ jnp.swapaxes(k, -2, -1) * scale, axis=-1)
    x_s = (a2 @ v).transpose(0, 2, 1, 3).reshape(B, N - n_t, C)
    x_cat = jnp.concatenate([x_mt, x_s], axis=1)
    return x_cat @ w_proj.T + b_proj


if __name__ == "__main__":
    # small shapes: B=2, dim=64, heads=8 (head_dim=8), template 4x4, search 4x4
    B, C, H = 2, 64, 8
    t_h = t_w = 4
    s_h = s_w = 4
    N = t_h * t_w + s_h * s_w

    key = jax.random.PRNGKey(0)
    kx, kqkv, kw, kb = jax.random.split(key, 4)
    x = jax.random.normal(kx, (B, N, C), dtype=jnp.float32)
    w_qkv = 0.05 * jax.random.normal(kqkv, (3 * C, C), dtype=jnp.float32)
    w_proj = 0.05 * jax.random.normal(kw, (C, C), dtype=jnp.float32)
    b_proj = 0.05 * jax.random.normal(kb, (C,), dtype=jnp.float32)

    # one-time weight preprocessing (would be cached alongside the params)
    w_qkv_t, w_proj_t, b_proj_r = prepare_attention_params(
        w_qkv, w_proj, b_proj, num_heads=H)

    out = attention_forward(x, w_qkv_t, w_proj_t, b_proj_r,
                            num_heads=H, t_h=t_h, t_w=t_w, s_h=s_h, s_w=s_w)
    out = jax.block_until_ready(out)

    ref = _reference(x, w_qkv, w_proj, b_proj, H, t_h * t_w)
    assert out.shape == (B, N, C)
    assert jnp.allclose(out, ref, atol=1e-4, rtol=1e-4), \
        f"max err {jnp.max(jnp.abs(out - ref))}"
    print("KERNEL_OK")
</pallas_src>

<mosaic_0001>
module attributes {stable_mosaic.version = 11 : i64} {
  func.func @_fused_attn_kernel(%arg0: i32, %arg1: memref<1x32x64xf32, #tpu.memory_space<vmem>>, %arg2: memref<64x192xf32, #tpu.memory_space<vmem>>, %arg3: memref<64x64xf32, #tpu.memory_space<vmem>>, %arg4: memref<1x64xf32, #tpu.memory_space<vmem>>, %arg5: memref<1x32x64xf32, #tpu.memory_space<vmem>>) attributes {dimension_semantics = [#tpu.dimension_semantics<parallel>], iteration_bounds = array<i64: 2>, scalar_prefetch = 0 : i64, scratch_operands = 0 : i64, tpu.core_type = #tpu.core_type<tc>, window_params = [{transform_indices = @transform_0, window_bounds = array<i64: 1, 32, 64>}, {pipeline_mode = #tpu.pipeline_mode<synchronous>, transform_indices = @transform_1, window_bounds = array<i64: 64, 192>}, {pipeline_mode = #tpu.pipeline_mode<synchronous>, transform_indices = @transform_2, window_bounds = array<i64: 64, 64>}, {pipeline_mode = #tpu.pipeline_mode<synchronous>, transform_indices = @transform_3, window_bounds = array<i64: 1, 64>}, {transform_indices = @transform_4, window_bounds = array<i64: 1, 32, 64>}]} {
    %c0 = arith.constant 0 : index
    %c0_0 = arith.constant 0 : index
    %c0_1 = arith.constant 0 : index
    %0 = vector.load %arg1[%c0, %c0_0, %c0_1] : memref<1x32x64xf32, #tpu.memory_space<vmem>>, vector<1x32x64xf32>
    %1 = vector.shape_cast %0 : vector<1x32x64xf32> to vector<32x64xf32>
    %c0_2 = arith.constant 0 : index
    %c0_3 = arith.constant 0 : index
    %2 = vector.load %arg2[%c0_2, %c0_3] : memref<64x192xf32, #tpu.memory_space<vmem>>, vector<64x192xf32>
    %cst = arith.constant dense<0.000000e+00> : vector<32x192xf32>
    %3 = tpu.matmul %1, %2, %cst {dimension_numbers = #tpu.dot_dimension_numbers<[1], [0], [0], [1], [0, 0, 1, 1], [], []>} : vector<32x64xf32>, vector<64x192xf32>, vector<32x192xf32> -> vector<32x192xf32>
    %4 = tpu.iota {dimensions = array<i32: 0>} : vector<32x32xi32>
    %5 = tpu.iota {dimensions = array<i32: 1>} : vector<32x32xi32>
    %c16_i32 = arith.constant 16 : i32
    %6 = vector.broadcast %c16_i32 : i32 to vector<32x32xi32>
    %7 = arith.cmpi sge, %4, %6 : vector<32x32xi32>
    %c16_i32_4 = arith.constant 16 : i32
    %8 = vector.broadcast %c16_i32_4 : i32 to vector<32x32xi32>
    %9 = arith.cmpi slt, %5, %8 : vector<32x32xi32>
    %10 = arith.ori %7, %9 : vector<32x32xi1>
    %cst_5 = arith.constant 0.000000e+00 : f32
    %cst_6 = arith.constant -1.000000e+30 : f32
    %11 = vector.broadcast %cst_5 : f32 to vector<32x32xf32>
    %12 = vector.broadcast %cst_6 : f32 to vector<32x32xf32>
    %13 = arith.select %10, %11, %12 : vector<32x32xi1>, vector<32x32xf32>
    %cst_7 = arith.constant 0.000000e+00 : f32
    %14 = vector.broadcast %cst_7 : f32 to vector<32x64xf32>
    %15 = vector.extract_strided_slice %3 {offsets = [0, 0], sizes = [32, 8], strides = [1, 1]} : vector<32x192xf32> to vector<32x8xf32>
    %16 = vector.extract_strided_slice %3 {offsets = [0, 64], sizes = [32, 8], strides = [1, 1]} : vector<32x192xf32> to vector<32x8xf32>
    %17 = vector.extract_strided_slice %3 {offsets = [0, 128], sizes = [32, 8], strides = [1, 1]} : vector<32x192xf32> to vector<32x8xf32>
    %cst_8 = arith.constant dense<0.000000e+00> : vector<32x32xf32>
    %18 = tpu.matmul %15, %16, %cst_8 {dimension_numbers = #tpu.dot_dimension_numbers<[1], [1], [0], [0], [0, 0, 1, 0], [], []>} : vector<32x8xf32>, vector<32x8xf32>, vector<32x32xf32> -> vector<32x32xf32>
    %19 = arith.addf %18, %13 : vector<32x32xf32>
    %cst_9 = arith.constant dense<0xFF800000> : vector<32xf32>
    %20 = vector.multi_reduction <maximumf>, %19, %cst_9 [1] : vector<32x32xf32> to vector<32xf32>
    %21 = vector.shape_cast %20 : vector<32xf32> to vector<32x1xf32>
    %22 = vector.broadcast %21 : vector<32x1xf32> to vector<32x32xf32>
    %23 = arith.subf %19, %22 : vector<32x32xf32>
    %24 = math.exp %23 : vector<32x32xf32>
    %cst_10 = arith.constant dense<0.000000e+00> : vector<32xf32>
    %25 = vector.multi_reduction <add>, %24, %cst_10 [1] : vector<32x32xf32> to vector<32xf32>
    %26 = vector.shape_cast %25 : vector<32xf32> to vector<32x1xf32>
    %27 = tpu.reciprocal %26 : vector<32x1xf32> -> vector<32x1xf32>
    %28 = vector.broadcast %27 : vector<32x1xf32> to vector<32x32xf32>
    %29 = arith.mulf %24, %28 : vector<32x32xf32>
    %cst_11 = arith.constant dense<0.000000e+00> : vector<32x8xf32>
    %30 = tpu.matmul %29, %17, %cst_11 {dimension_numbers = #tpu.dot_dimension_numbers<[1], [0], [0], [1], [0, 0, 1, 1], [], []>} : vector<32x32xf32>, vector<32x8xf32>, vector<32x8xf32> -> vector<32x8xf32>
    %c0_12 = arith.constant 0 : index
    %c0_13 = arith.constant 0 : index
    %31 = vector.load %arg3[%c0_12, %c0_13] : memref<64x64xf32, #tpu.memory_space<vmem>>, vector<8x64xf32>
    %cst_14 = arith.constant dense<0.000000e+00> : vector<32x64xf32>
    %32 = tpu.matmul %30, %31, %cst_14 {dimension_numbers = #tpu.dot_dimension_numbers<[1], [0], [0], [1], [0, 0, 1, 1], [], []>} : vector<32x8xf32>, vector<8x64xf32>, vector<32x64xf32> -> vector<32x64xf32>
    %33 = arith.addf %14, %32 : vector<32x64xf32>
    %34 = vector.extract_strided_slice %3 {offsets = [0, 8], sizes = [32, 8], strides = [1, 1]} : vector<32x192xf32> to vector<32x8xf32>
    %35 = vector.extract_strided_slice %3 {offsets = [0, 72], sizes = [32, 8], strides = [1, 1]} : vector<32x192xf32> to vector<32x8xf32>
    %36 = vector.extract_strided_slice %3 {offsets = [0, 136], sizes = [32, 8], strides = [1, 1]} : vector<32x192xf32> to vector<32x8xf32>
    %cst_15 = arith.constant dense<0.000000e+00> : vector<32x32xf32>
    %37 = tpu.matmul %34, %35, %cst_15 {dimension_numbers = #tpu.dot_dimension_numbers<[1], [1], [0], [0], [0, 0, 1, 0], [], []>} : vector<32x8xf32>, vector<32x8xf32>, vector<32x32xf32> -> vector<32x32xf32>
    %38 = arith.addf %37, %13 : vector<32x32xf32>
    %cst_16 = arith.constant dense<0xFF800000> : vector<32xf32>
    %39 = vector.multi_reduction <maximumf>, %38, %cst_16 [1] : vector<32x32xf32> to vector<32xf32>
    %40 = vector.shape_cast %39 : vector<32xf32> to vector<32x1xf32>
    %41 = vector.broadcast %40 : vector<32x1xf32> to vector<32x32xf32>
    %42 = arith.subf %38, %41 : vector<32x32xf32>
    %43 = math.exp %42 : vector<32x32xf32>
    %cst_17 = arith.constant dense<0.000000e+00> : vector<32xf32>
    %44 = vector.multi_reduction <add>, %43, %cst_17 [1] : vector<32x32xf32> to vector<32xf32>
    %45 = vector.shape_cast %44 : vector<32xf32> to vector<32x1xf32>
    %46 = tpu.reciprocal %45 : vector<32x1xf32> -> vector<32x1xf32>
    %47 = vector.broadcast %46 : vector<32x1xf32> to vector<32x32xf32>
    %48 = arith.mulf %43, %47 : vector<32x32xf32>
    %cst_18 = arith.constant dense<0.000000e+00> : vector<32x8xf32>
    %49 = tpu.matmul %48, %36, %cst_18 {dimension_numbers = #tpu.dot_dimension_numbers<[1], [0], [0], [1], [0, 0, 1, 1], [], []>} : vector<32x32xf32>, vector<32x8xf32>, vector<32x8xf32> -> vector<32x8xf32>
    %c8 = arith.constant 8 : index
    %c0_19 = arith.constant 0 : index
    %50 = vector.load %arg3[%c8, %c0_19] : memref<64x64xf32, #tpu.memory_space<vmem>>, vector<8x64xf32>
    %cst_20 = arith.constant dense<0.000000e+00> : vector<32x64xf32>
    %51 = tpu.matmul %49, %50, %cst_20 {dimension_numbers = #tpu.dot_dimension_numbers<[1], [0], [0], [1], [0, 0, 1, 1], [], []>} : vector<32x8xf32>, vector<8x64xf32>, vector<32x64xf32> -> vector<32x64xf32>
    %52 = arith.addf %33, %51 : vector<32x64xf32>
    %53 = vector.extract_strided_slice %3 {offsets = [0, 16], sizes = [32, 8], strides = [1, 1]} : vector<32x192xf32> to vector<32x8xf32>
    %54 = vector.extract_strided_slice %3 {offsets = [0, 80], sizes = [32, 8], strides = [1, 1]} : vector<32x192xf32> to vector<32x8xf32>
    %55 = vector.extract_strided_slice %3 {offsets = [0, 144], sizes = [32, 8], strides = [1, 1]} : vector<32x192xf32> to vector<32x8xf32>
    %cst_21 = arith.constant dense<0.000000e+00> : vector<32x32xf32>
    %56 = tpu.matmul %53, %54, %cst_21 {dimension_numbers = #tpu.dot_dimension_numbers<[1], [1], [0], [0], [0, 0, 1, 0], [], []>} : vector<32x8xf32>, vector<32x8xf32>, vector<32x32xf32> -> vector<32x32xf32>
    %57 = arith.addf %56, %13 : vector<32x32xf32>
    %cst_22 = arith.constant dense<0xFF800000> : vector<32xf32>
    %58 = vector.multi_reduction <maximumf>, %57, %cst_22 [1] : vector<32x32xf32> to vector<32xf32>
    %59 = vector.shape_cast %58 : vector<32xf32> to vector<32x1xf32>
    %60 = vector.broadcast %59 : vector<32x1xf32> to vector<32x32xf32>
    %61 = arith.subf %57, %60 : vector<32x32xf32>
    %62 = math.exp %61 : vector<32x32xf32>
    %cst_23 = arith.constant dense<0.000000e+00> : vector<32xf32>
    %63 = vector.multi_reduction <add>, %62, %cst_23 [1] : vector<32x32xf32> to vector<32xf32>
    %64 = vector.shape_cast %63 : vector<32xf32> to vector<32x1xf32>
    %65 = tpu.reciprocal %64 : vector<32x1xf32> -> vector<32x1xf32>
    %66 = vector.broadcast %65 : vector<32x1xf32> to vector<32x32xf32>
    %67 = arith.mulf %62, %66 : vector<32x32xf32>
    %cst_24 = arith.constant dense<0.000000e+00> : vector<32x8xf32>
    %68 = tpu.matmul %67, %55, %cst_24 {dimension_numbers = #tpu.dot_dimension_numbers<[1], [0], [0], [1], [0, 0, 1, 1], [], []>} : vector<32x32xf32>, vector<32x8xf32>, vector<32x8xf32> -> vector<32x8xf32>
    %c16 = arith.constant 16 : index
    %c0_25 = arith.constant 0 : index
    %69 = vector.load %arg3[%c16, %c0_25] : memref<64x64xf32, #tpu.memory_space<vmem>>, vector<8x64xf32>
    %cst_26 = arith.constant dense<0.000000e+00> : vector<32x64xf32>
    %70 = tpu.matmul %68, %69, %cst_26 {dimension_numbers = #tpu.dot_dimension_numbers<[1], [0], [0], [1], [0, 0, 1, 1], [], []>} : vector<32x8xf32>, vector<8x64xf32>, vector<32x64xf32> -> vector<32x64xf32>
    %71 = arith.addf %52, %70 : vector<32x64xf32>
    %72 = vector.extract_strided_slice %3 {offsets = [0, 24], sizes = [32, 8], strides = [1, 1]} : vector<32x192xf32> to vector<32x8xf32>
    %73 = vector.extract_strided_slice %3 {offsets = [0, 88], sizes = [32, 8], strides = [1, 1]} : vector<32x192xf32> to vector<32x8xf32>
    %74 = vector.extract_strided_slice %3 {offsets = [0, 152], sizes = [32, 8], strides = [1, 1]} : vector<32x192xf32> to vector<32x8xf32>
    %cst_27 = arith.constant dense<0.000000e+00> : vector<32x32xf32>
    %75 = tpu.matmul %72, %73, %cst_27 {dimension_numbers = #tpu.dot_dimension_numbers<[1], [1], [0], [0], [0, 0, 1, 0], [], []>} : vector<32x8xf32>, vector<32x8xf32>, vector<32x32xf32> -> vector<32x32xf32>
    %76 = arith.addf %75, %13 : vector<32x32xf32>
    %cst_28 = arith.constant dense<0xFF800000> : vector<32xf32>
    %77 = vector.multi_reduction <maximumf>, %76, %cst_28 [1] : vector<32x32xf32> to vector<32xf32>
    %78 = vector.shape_cast %77 : vector<32xf32> to vector<32x1xf32>
    %79 = vector.broadcast %78 : vector<32x1xf32> to vector<32x32xf32>
    %80 = arith.subf %76, %79 : vector<32x32xf32>
    %81 = math.exp %80 : vector<32x32xf32>
    %cst_29 = arith.constant dense<0.000000e+00> : vector<32xf32>
    %82 = vector.multi_reduction <add>, %81, %cst_29 [1] : vector<32x32xf32> to vector<32xf32>
    %83 = vector.shape_cast %82 : vector<32xf32> to vector<32x1xf32>
    %84 = tpu.reciprocal %83 : vector<32x1xf32> -> vector<32x1xf32>
    %85 = vector.broadcast %84 : vector<32x1xf32> to vector<32x32xf32>
    %86 = arith.mulf %81, %85 : vector<32x32xf32>
    %cst_30 = arith.constant dense<0.000000e+00> : vector<32x8xf32>
    %87 = tpu.matmul %86, %74, %cst_30 {dimension_numbers = #tpu.dot_dimension_numbers<[1], [0], [0], [1], [0, 0, 1, 1], [], []>} : vector<32x32xf32>, vector<32x8xf32>, vector<32x8xf32> -> vector<32x8xf32>
    %c24 = arith.constant 24 : index
    %c0_31 = arith.constant 0 : index
    %88 = vector.load %arg3[%c24, %c0_31] : memref<64x64xf32, #tpu.memory_space<vmem>>, vector<8x64xf32>
    %cst_32 = arith.constant dense<0.000000e+00> : vector<32x64xf32>
    %89 = tpu.matmul %87, %88, %cst_32 {dimension_numbers = #tpu.dot_dimension_numbers<[1], [0], [0], [1], [0, 0, 1, 1], [], []>} : vector<32x8xf32>, vector<8x64xf32>, vector<32x64xf32> -> vector<32x64xf32>
    %90 = arith.addf %71, %89 : vector<32x64xf32>
    %91 = vector.extract_strided_slice %3 {offsets = [0, 32], sizes = [32, 8], strides = [1, 1]} : vector<32x192xf32> to vector<32x8xf32>
    %92 = vector.extract_strided_slice %3 {offsets = [0, 96], sizes = [32, 8], strides = [1, 1]} : vector<32x192xf32> to vector<32x8xf32>
    %93 = vector.extract_strided_slice %3 {offsets = [0, 160], sizes = [32, 8], strides = [1, 1]} : vector<32x192xf32> to vector<32x8xf32>
    %cst_33 = arith.constant dense<0.000000e+00> : vector<32x32xf32>
    %94 = tpu.matmul %91, %92, %cst_33 {dimension_numbers = #tpu.dot_dimension_numbers<[1], [1], [0], [0], [0, 0, 1, 0], [], []>} : vector<32x8xf32>, vector<32x8xf32>, vector<32x32xf32> -> vector<32x32xf32>
    %95 = arith.addf %94, %13 : vector<32x32xf32>
    %cst_34 = arith.constant dense<0xFF800000> : vector<32xf32>
    %96 = vector.multi_reduction <maximumf>, %95, %cst_34 [1] : vector<32x32xf32> to vector<32xf32>
    %97 = vector.shape_cast %96 : vector<32xf32> to vector<32x1xf32>
    %98 = vector.broadcast %97 : vector<32x1xf32> to vector<32x32xf32>
    %99 = arith.subf %95, %98 : vector<32x32xf32>
    %100 = math.exp %99 : vector<32x32xf32>
    %cst_35 = arith.constant dense<0.000000e+00> : vector<32xf32>
    %101 = vector.multi_reduction <add>, %100, %cst_35 [1] : vector<32x32xf32> to vector<32xf32>
    %102 = vector.shape_cast %101 : vector<32xf32> to vector<32x1xf32>
    %103 = tpu.reciprocal %102 : vector<32x1xf32> -> vector<32x1xf32>
    %104 = vector.broadcast %103 : vector<32x1xf32> to vector<32x32xf32>
    %105 = arith.mulf %100, %104 : vector<32x32xf32>
    %cst_36 = arith.constant dense<0.000000e+00> : vector<32x8xf32>
    %106 = tpu.matmul %105, %93, %cst_36 {dimension_numbers = #tpu.dot_dimension_numbers<[1], [0], [0], [1], [0, 0, 1, 1], [], []>} : vector<32x32xf32>, vector<32x8xf32>, vector<32x8xf32> -> vector<32x8xf32>
    %c32 = arith.constant 32 : index
    %c0_37 = arith.constant 0 : index
    %107 = vector.load %arg3[%c32, %c0_37] : memref<64x64xf32, #tpu.memory_space<vmem>>, vector<8x64xf32>
    %cst_38 = arith.constant dense<0.000000e+00> : vector<32x64xf32>
    %108 = tpu.matmul %106, %107, %cst_38 {dimension_numbers = #tpu.dot_dimension_numbers<[1], [0], [0], [1], [0, 0, 1, 1], [], []>} : vector<32x8xf32>, vector<8x64xf32>, vector<32x64xf32> -> vector<32x64xf32>
    %109 = arith.addf %90, %108 : vector<32x64xf32>
    %110 = vector.extract_strided_slice %3 {offsets = [0, 40], sizes = [32, 8], strides = [1, 1]} : vector<32x192xf32> to vector<32x8xf32>
    %111 = vector.extract_strided_slice %3 {offsets = [0, 104], sizes = [32, 8], strides = [1, 1]} : vector<32x192xf32> to vector<32x8xf32>
    %112 = vector.extract_strided_slice %3 {offsets = [0, 168], sizes = [32, 8], strides = [1, 1]} : vector<32x192xf32> to vector<32x8xf32>
    %cst_39 = arith.constant dense<0.000000e+00> : vector<32x32xf32>
    %113 = tpu.matmul %110, %111, %cst_39 {dimension_numbers = #tpu.dot_dimension_numbers<[1], [1], [0], [0], [0, 0, 1, 0], [], []>} : vector<32x8xf32>, vector<32x8xf32>, vector<32x32xf32> -> vector<32x32xf32>
    %114 = arith.addf %113, %13 : vector<32x32xf32>
    %cst_40 = arith.constant dense<0xFF800000> : vector<32xf32>
    %115 = vector.multi_reduction <maximumf>, %114, %cst_40 [1] : vector<32x32xf32> to vector<32xf32>
    %116 = vector.shape_cast %115 : vector<32xf32> to vector<32x1xf32>
    %117 = vector.broadcast %116 : vector<32x1xf32> to vector<32x32xf32>
    %118 = arith.subf %114, %117 : vector<32x32xf32>
    %119 = math.exp %118 : vector<32x32xf32>
    %cst_41 = arith.constant dense<0.000000e+00> : vector<32xf32>
    %120 = vector.multi_reduction <add>, %119, %cst_41 [1] : vector<32x32xf32> to vector<32xf32>
    %121 = vector.shape_cast %120 : vector<32xf32> to vector<32x1xf32>
    %122 = tpu.reciprocal %121 : vector<32x1xf32> -> vector<32x1xf32>
    %123 = vector.broadcast %122 : vector<32x1xf32> to vector<32x32xf32>
    %124 = arith.mulf %119, %123 : vector<32x32xf32>
    %cst_42 = arith.constant dense<0.000000e+00> : vector<32x8xf32>
    %125 = tpu.matmul %124, %112, %cst_42 {dimension_numbers = #tpu.dot_dimension_numbers<[1], [0], [0], [1], [0, 0, 1, 1], [], []>} : vector<32x32xf32>, vector<32x8xf32>, vector<32x8xf32> -> vector<32x8xf32>
    %c40 = arith.constant 40 : index
    %c0_43 = arith.constant 0 : index
    %126 = vector.load %arg3[%c40, %c0_43] : memref<64x64xf32, #tpu.memory_space<vmem>>, vector<8x64xf32>
    %cst_44 = arith.constant dense<0.000000e+00> : vector<32x64xf32>
    %127 = tpu.matmul %125, %126, %cst_44 {dimension_numbers = #tpu.dot_dimension_numbers<[1], [0], [0], [1], [0, 0, 1, 1], [], []>} : vector<32x8xf32>, vector<8x64xf32>, vector<32x64xf32> -> vector<32x64xf32>
    %128 = arith.addf %109, %127 : vector<32x64xf32>
    %129 = vector.extract_strided_slice %3 {offsets = [0, 48], sizes = [32, 8], strides = [1, 1]} : vector<32x192xf32> to vector<32x8xf32>
    %130 = vector.extract_strided_slice %3 {offsets = [0, 112], sizes = [32, 8], strides = [1, 1]} : vector<32x192xf32> to vector<32x8xf32>
    %131 = vector.extract_strided_slice %3 {offsets = [0, 176], sizes = [32, 8], strides = [1, 1]} : vector<32x192xf32> to vector<32x8xf32>
    %cst_45 = arith.constant dense<0.000000e+00> : vector<32x32xf32>
    %132 = tpu.matmul %129, %130, %cst_45 {dimension_numbers = #tpu.dot_dimension_numbers<[1], [1], [0], [0], [0, 0, 1, 0], [], []>} : vector<32x8xf32>, vector<32x8xf32>, vector<32x32xf32> -> vector<32x32xf32>
    %133 = arith.addf %132, %13 : vector<32x32xf32>
    %cst_46 = arith.constant dense<0xFF800000> : vector<32xf32>
    %134 = vector.multi_reduction <maximumf>, %133, %cst_46 [1] : vector<32x32xf32> to vector<32xf32>
    %135 = vector.shape_cast %134 : vector<32xf32> to vector<32x1xf32>
    %136 = vector.broadcast %135 : vector<32x1xf32> to vector<32x32xf32>
    %137 = arith.subf %133, %136 : vector<32x32xf32>
    %138 = math.exp %137 : vector<32x32xf32>
    %cst_47 = arith.constant dense<0.000000e+00> : vector<32xf32>
    %139 = vector.multi_reduction <add>, %138, %cst_47 [1] : vector<32x32xf32> to vector<32xf32>
    %140 = vector.shape_cast %139 : vector<32xf32> to vector<32x1xf32>
    %141 = tpu.reciprocal %140 : vector<32x1xf32> -> vector<32x1xf32>
    %142 = vector.broadcast %141 : vector<32x1xf32> to vector<32x32xf32>
    %143 = arith.mulf %138, %142 : vector<32x32xf32>
    %cst_48 = arith.constant dense<0.000000e+00> : vector<32x8xf32>
    %144 = tpu.matmul %143, %131, %cst_48 {dimension_numbers = #tpu.dot_dimension_numbers<[1], [0], [0], [1], [0, 0, 1, 1], [], []>} : vector<32x32xf32>, vector<32x8xf32>, vector<32x8xf32> -> vector<32x8xf32>
    %c48 = arith.constant 48 : index
    %c0_49 = arith.constant 0 : index
    %145 = vector.load %arg3[%c48, %c0_49] : memref<64x64xf32, #tpu.memory_space<vmem>>, vector<8x64xf32>
    %cst_50 = arith.constant dense<0.000000e+00> : vector<32x64xf32>
    %146 = tpu.matmul %144, %145, %cst_50 {dimension_numbers = #tpu.dot_dimension_numbers<[1], [0], [0], [1], [0, 0, 1, 1], [], []>} : vector<32x8xf32>, vector<8x64xf32>, vector<32x64xf32> -> vector<32x64xf32>
    %147 = arith.addf %128, %146 : vector<32x64xf32>
    %148 = vector.extract_strided_slice %3 {offsets = [0, 56], sizes = [32, 8], strides = [1, 1]} : vector<32x192xf32> to vector<32x8xf32>
    %149 = vector.extract_strided_slice %3 {offsets = [0, 120], sizes = [32, 8], strides = [1, 1]} : vector<32x192xf32> to vector<32x8xf32>
    %150 = vector.extract_strided_slice %3 {offsets = [0, 184], sizes = [32, 8], strides = [1, 1]} : vector<32x192xf32> to vector<32x8xf32>
    %cst_51 = arith.constant dense<0.000000e+00> : vector<32x32xf32>
    %151 = tpu.matmul %148, %149, %cst_51 {dimension_numbers = #tpu.dot_dimension_numbers<[1], [1], [0], [0], [0, 0, 1, 0], [], []>} : vector<32x8xf32>, vector<32x8xf32>, vector<32x32xf32> -> vector<32x32xf32>
    %152 = arith.addf %151, %13 : vector<32x32xf32>
    %cst_52 = arith.constant dense<0xFF800000> : vector<32xf32>
    %153 = vector.multi_reduction <maximumf>, %152, %cst_52 [1] : vector<32x32xf32> to vector<32xf32>
    %154 = vector.shape_cast %153 : vector<32xf32> to vector<32x1xf32>
    %155 = vector.broadcast %154 : vector<32x1xf32> to vector<32x32xf32>
    %156 = arith.subf %152, %155 : vector<32x32xf32>
    %157 = math.exp %156 : vector<32x32xf32>
    %cst_53 = arith.constant dense<0.000000e+00> : vector<32xf32>
    %158 = vector.multi_reduction <add>, %157, %cst_53 [1] : vector<32x32xf32> to vector<32xf32>
    %159 = vector.shape_cast %158 : vector<32xf32> to vector<32x1xf32>
    %160 = tpu.reciprocal %159 : vector<32x1xf32> -> vector<32x1xf32>
    %161 = vector.broadcast %160 : vector<32x1xf32> to vector<32x32xf32>
    %162 = arith.mulf %157, %161 : vector<32x32xf32>
    %cst_54 = arith.constant dense<0.000000e+00> : vector<32x8xf32>
    %163 = tpu.matmul %162, %150, %cst_54 {dimension_numbers = #tpu.dot_dimension_numbers<[1], [0], [0], [1], [0, 0, 1, 1], [], []>} : vector<32x32xf32>, vector<32x8xf32>, vector<32x8xf32> -> vector<32x8xf32>
    %c56 = arith.constant 56 : index
    %c0_55 = arith.constant 0 : index
    %164 = vector.load %arg3[%c56, %c0_55] : memref<64x64xf32, #tpu.memory_space<vmem>>, vector<8x64xf32>
    %cst_56 = arith.constant dense<0.000000e+00> : vector<32x64xf32>
    %165 = tpu.matmul %163, %164, %cst_56 {dimension_numbers = #tpu.dot_dimension_numbers<[1], [0], [0], [1], [0, 0, 1, 1], [], []>} : vector<32x8xf32>, vector<8x64xf32>, vector<32x64xf32> -> vector<32x64xf32>
    %166 = arith.addf %147, %165 : vector<32x64xf32>
    %c0_57 = arith.constant 0 : index
    %c0_58 = arith.constant 0 : index
    %167 = vector.load %arg4[%c0_57, %c0_58] : memref<1x64xf32, #tpu.memory_space<vmem>>, vector<1x64xf32>
    %168 = vector.broadcast %167 : vector<1x64xf32> to vector<32x64xf32>
    %169 = arith.addf %166, %168 : vector<32x64xf32>
    %c0_59 = arith.constant 0 : index
    %c0_60 = arith.constant 0 : index
    %c0_61 = arith.constant 0 : index
    %170 = vector.load %arg5[%c0_59, %c0_60, %c0_61] : memref<1x32x64xf32, #tpu.memory_space<vmem>>, vector<1x32x64xf32>
    %171 = vector.shape_cast %170 : vector<1x32x64xf32> to vector<32x64xf32>
    %172 = vector.shape_cast %169 : vector<32x64xf32> to vector<1x32x64xf32>
    tpu.vector_store %arg5[%c0_59, %c0_60, %c0_61], %172 {strides = array<i32>} : memref<1x32x64xf32, #tpu.memory_space<vmem>>, vector<1x32x64xf32>,
    return
  }
  func.func @transform_0(%arg0: i32) -> (i32, i32, i32) {
    %c0_i32 = arith.constant 0 : i32
    %c0_i32_0 = arith.constant 0 : i32
    %c0_i32_1 = arith.constant 0 : i32
    return %arg0, %c0_i32, %c0_i32_0 : i32, i32, i32
  }
  func.func @transform_1(%arg0: i32) -> (i32, i32) {
    %c0_i32 = arith.constant 0 : i32
    %c0_i32_0 = arith.constant 0 : i32
    %c0_i32_1 = arith.constant 0 : i32
    return %c0_i32, %c0_i32_0 : i32, i32
  }
  func.func @transform_2(%arg0: i32) -> (i32, i32) {
    %c0_i32 = arith.constant 0 : i32
    %c0_i32_0 = arith.constant 0 : i32
    %c0_i32_1 = arith.constant 0 : i32
    return %c0_i32, %c0_i32_0 : i32, i32
  }
  func.func @transform_3(%arg0: i32) -> (i32, i32) {
    %c0_i32 = arith.constant 0 : i32
    %c0_i32_0 = arith.constant 0 : i32
    %c0_i32_1 = arith.constant 0 : i32
    return %c0_i32, %c0_i32_0 : i32, i32
  }
  func.func @transform_4(%arg0: i32) -> (i32, i32, i32) {
    %c0_i32 = arith.constant 0 : i32
    %c0_i32_0 = arith.constant 0 : i32
    %c0_i32_1 = arith.constant 0 : i32
    return %arg0, %c0_i32, %c0_i32_0 : i32, i32, i32
  }
}

</mosaic_0001>

<llo_original>
// kernel: attention_forward.1
$region0: #{attention_forward.1}
  #allocation0 [shape = 'u32[]', space=smem, size = 0x4, offset = 0x4, fixed_abs, tag = 'smem constant byte address 0x4 - core index']
  #allocation1 [shape = 'u32[72,128]{1,0:T(1,128)}', space=vmem, size = 0x9000, scoped, tag = 'internal scratch']
  %s0 = inlined_call_operand.hbm [shape: f32[2,32,64], index: 0, kind: input, shape index: {}]
  %s1 = inlined_call_operand.hbm [shape: f32[64,192], index: 1, kind: input, shape index: {}]
  %s2 = inlined_call_operand.hbm [shape: f32[64,64], index: 2, kind: input, shape index: {}]
  %s3 = inlined_call_operand.vmem [shape: f32[1,64], index: 3, kind: input, shape index: {}]
  %s4 = inlined_call_operand.hbm [shape: f32[2,32,64], index: 4, kind: output, shape index: {}]
  %s5 = sld [smem:[#allocation0]]
  $region61: #{attention_forward.1} parent=0
    _
  %s7 = ssub.s32 1, %s5
  %s8 = scalar_select 0, %s7, %s5
  $region1: #{attention_forward.1} parent=0
    #allocation2 [shape = 'u8[32768]{0}', space=vmem, size = 0x8000, scoped, tag = 'input window, operand 0']
    #allocation3 [shape = 's32[2]{0}', space=sflag, size = 0x8, scoped, tag = 'scoped memory for attention_forward.1']
    #allocation4 [shape = 's32[2]{0}', space=sflag, size = 0x8, scoped, tag = 'scoped memory for attention_forward.1']
    #allocation5 [shape = 'u8[65536]{0}', space=vmem, size = 0x10000, scoped, tag = 'input window, operand 1, single buffered']
    #allocation6 [shape = 's32[1]{0}', space=sflag, size = 0x4, scoped, tag = 'scoped memory for attention_forward.1']
    #allocation7 [shape = 'u8[32768]{0}', space=vmem, size = 0x8000, scoped, tag = 'input window, operand 2, single buffered']
    #allocation8 [shape = 'u8[32768]{0}', space=vmem, size = 0x8000, scoped, tag = 'output window, operand 0']
    %9 = vsyncpa [#allocation3], 0
    %s10 = scalar_lea.sflag [#allocation3], 1
    %11 = vsyncpa %s10, 0
    %12 = vsyncpa [#allocation6], 0
    %13 = vsyncpa [#allocation4], 0
    %s14 = scalar_lea.sflag [#allocation4], 1
    %15 = vsyncpa %s14, 0
    loop: start=0, step=1, limit=4
    $region2: #{attention_forward.1} parent=1 // loop_pre_header
      _
    $region3: #{attention_forward.1} parent=1 // loop_header
      %s17 = sphi 0, %s21
      %p18 = scmp.ge.s32.totalorder %s17, 4
      %s27 = sphi 0, %s29
      %s30 = sphi 0, %s27
      %s31 = sphi 0, %s30
      %s47 = sphi 0, %s31
      %s51 = sphi 0, %s51
      %s53 = sphi 0, %s51
      %s54 = sphi 0, %s53
      %s68 = sphi 0, %s54
      %s72 = sphi 0, %s72
      %s74 = sphi 0, %s72
      %s75 = sphi 0, %s74
      %s89 = sphi 0, %s75
      %s93 = sphi 0, %s93
      %s95 = sphi 0, %s93
      %s96 = sphi 0, %s95
      %s110 = sphi 0, %s96
      %s116 = sphi 0, %s118
      %s119 = sphi 0, %s116
      %s120 = sphi 0, %s119
      %s136 = sphi 0, %s120
    $region4: #{attention_forward.1} parent=1 // loop_header_branch
      %20 = sbr.rel (%p18) target = $region8
    $region5: #{attention_forward.1} parent=1 // loop_body
      %s22 = ssub.s32 %s17, 1
      %s23 = ssub.s32 %s17, 2
      %s24 = sadd.s32 %s17, 1
      %s25 = ssub.s32 %s17, %s24
      %p26 = scmp.eq.s32.totalorder %s25, 0
      %s28 = sadd.s32 %s27, 1
      %s29 = scalar_select %p26, %s27, %s28
      %p32 = pneg %p26
      %p33 = scmp.eq.s32.totalorder %s17, 1
      %p34 = por %p32, %p33
      %p35 = scmp.ne.s32.totalorder %s27, %s30
      %p36 = scmp.eq.s32.totalorder %s17, 0
      %p37 = por %p35, %p36
      %p38 = scmp.ne.s32.totalorder %s27, %s30
      %p39 = scmp.eq.s32.totalorder %s22, 1
      %p40 = por %p38, %p39
      %p41 = scmp.ne.s32.totalorder %s30, %s31
      %p42 = scmp.eq.s32.totalorder %s22, 0
      %p43 = por %p41, %p42
      %p44 = scmp.ne.s32.totalorder %s30, %s31
      %p45 = scmp.eq.s32.totalorder %s23, 1
      %p46 = por %p44, %p45
      %p48 = scmp.ne.s32.totalorder %s31, %s47
      %p49 = scmp.eq.s32.totalorder %s23, 0
      %p50 = por %p48, %p49
      %s52 = sadd.s32 %s51, 1
      %p55 = scmp.eq.s32.totalorder %s17, 1
      %p56 = scmp.ne.s32.totalorder %s51, %s53
      %p57 = scmp.eq.s32.totalorder %s17, 0
      %p58 = por %p56, %p57
      %p59 = scmp.ne.s32.totalorder %s51, %s53
      %p60 = scmp.eq.s32.totalorder %s22, 1
      %p61 = por %p59, %p60
      %p62 = scmp.ne.s32.totalorder %s53, %s54
      %p63 = scmp.eq.s32.totalorder %s22, 0
      %p64 = por %p62, %p63
      %p65 = scmp.ne.s32.totalorder %s53, %s54
      %p66 = scmp.eq.s32.totalorder %s23, 1
      %p67 = por %p65, %p66
      %p69 = scmp.ne.s32.totalorder %s54, %s68
      %p70 = scmp.eq.s32.totalorder %s23, 0
      %p71 = por %p69, %p70
      %s73 = sadd.s32 %s72, 1
      %p76 = scmp.eq.s32.totalorder %s17, 1
      %p77 = scmp.ne.s32.totalorder %s72, %s74
      %p78 = scmp.eq.s32.totalorder %s17, 0
      %p79 = por %p77, %p78
      %p80 = scmp.ne.s32.totalorder %s72, %s74
      %p81 = scmp.eq.s32.totalorder %s22, 1
      %p82 = por %p80, %p81
      %p83 = scmp.ne.s32.totalorder %s74, %s75
      %p84 = scmp.eq.s32.totalorder %s22, 0
      %p85 = por %p83, %p84
      %p86 = scmp.ne.s32.totalorder %s74, %s75
      %p87 = scmp.eq.s32.totalorder %s23, 1
      %p88 = por %p86, %p87
      %p90 = scmp.ne.s32.totalorder %s75, %s89
      %p91 = scmp.eq.s32.totalorder %s23, 0
      %p92 = por %p90, %p91
      %s94 = sadd.s32 %s93, 1
      %p97 = scmp.eq.s32.totalorder %s17, 1
      %p98 = scmp.ne.s32.totalorder %s93, %s95
      %p99 = scmp.eq.s32.totalorder %s17, 0
      %p100 = por %p98, %p99
      %p101 = scmp.ne.s32.totalorder %s93, %s95
      %p102 = scmp.eq.s32.totalorder %s22, 1
      %p103 = por %p101, %p102
      %p104 = scmp.ne.s32.totalorder %s95, %s96
      %p105 = scmp.eq.s32.totalorder %s22, 0
      %p106 = por %p104, %p105
      %p107 = scmp.ne.s32.totalorder %s95, %s96
      %p108 = scmp.eq.s32.totalorder %s23, 1
      %p109 = por %p107, %p108
      %p111 = scmp.ne.s32.totalorder %s96, %s110
      %p112 = scmp.eq.s32.totalorder %s23, 0
      %p113 = por %p111, %p112
      %s114 = ssub.s32 %s17, %s24
      %p115 = scmp.eq.s32.totalorder %s114, 0
      %s117 = sadd.s32 %s116, 1
      %s118 = scalar_select %p115, %s116, %s117
      %p121 = pneg %p115
      %p122 = scmp.eq.s32.totalorder %s17, 1
      %p123 = por %p121, %p122
      %p124 = scmp.ne.s32.totalorder %s116, %s119
      %p125 = scmp.eq.s32.totalorder %s17, 0
      %p126 = por %p124, %p125
      %p127 = scmp.ne.s32.totalorder %s116, %s119
      %p128 = scmp.eq.s32.totalorder %s22, 1
      %p129 = por %p127, %p128
      %p130 = scmp.ne.s32.totalorder %s119, %s120
      %p131 = scmp.eq.s32.totalorder %s22, 0
      %p132 = por %p130, %p131
      %p133 = scmp.ne.s32.totalorder %s119, %s120
      %p134 = scmp.eq.s32.totalorder %s23, 1
      %p135 = por %p133, %p134
      %p137 = scmp.ne.s32.totalorder %s120, %s136
      %p138 = scmp.eq.s32.totalorder %s23, 0
      %p139 = por %p137, %p138
      %p140 = scmp.le.s32.totalorder 1, %s17
      %p141 = scmp.lt.s32.totalorder %s17, 3
      %p142 = pnand %p140, %p141
      %p143 = pneg %p142
      // Predicated region
      $region9: #{attention_forward.1} parent=5 // pred_check
        _
      $region10: #{attention_forward.1} parent=5 // pred_check_branch
        %145 = sbr.rel (%p142) target = $region12
      $region11: #{attention_forward.1} parent=5 // pred_region
        %s146 = ssub.s32 %s17, 1
        // Predicated region
        $region13: #{attention_forward.1} parent=11 // pred_check
          %p147 = pneg %p64
        $region14: #{attention_forward.1} parent=11 // pred_check_branch
          %149 = sbr.rel (%p147) target = $region16
        $region15: #{attention_forward.1} parent=11 // pred_region
          %151 = vsyncadd [#allocation6], 0
          %s152 = sshll.u32 %s1, 4
          %s153 = int_to_ptr.hbm [resolvable:$true] %s152
          %s154 = sshll.u32 [#allocation5], 4
          %s155 = int_to_ptr.vmem [resolvable:$true] %s154
          %160 = dma.hbm_to_vmem [thread:$0]  %s153, 2048, %s155, [#allocation6], 256, 256, 16
        $region16: #{attention_forward.1} parent=11 // pred_fallthru
          _
        // Predicated region
        $region17: #{attention_forward.1} parent=11 // pred_check
          %p161 = pneg %p85
        $region18: #{attention_forward.1} parent=11 // pred_check_branch
          %163 = sbr.rel (%p161) target = $region20
        $region19: #{attention_forward.1} parent=11 // pred_region
          %165 = vsyncadd [#allocation6], 0
          %s166 = sshll.u32 %s2, 4
          %s167 = int_to_ptr.hbm [resolvable:$true] %s166
          %s168 = sshll.u32 [#allocation7], 4
          %s169 = int_to_ptr.vmem [resolvable:$true] %s168
          %174 = dma.hbm_to_vmem [thread:$0]  %s167, 1024, %s169, [#allocation6], 128, 128, 8
        $region20: #{attention_forward.1} parent=11 // pred_fallthru
          _
        // Predicated region
        $region21: #{attention_forward.1} parent=11 // pred_check
          %p175 = pneg %p106
        $region22: #{attention_forward.1} parent=11 // pred_check_branch
          %177 = sbr.rel (%p175) target = $region24
        $region23: #{attention_forward.1} parent=11 // pred_region
          _
        $region24: #{attention_forward.1} parent=11 // pred_fallthru
          _
      $region12: #{attention_forward.1} parent=5 // pred_fallthru
        _
      %p178 = scmp.lt.s32.totalorder %s17, 2
      // Predicated region
      $region25: #{attention_forward.1} parent=5 // pred_check
        %p179 = pneg %p178
      $region26: #{attention_forward.1} parent=5 // pred_check_branch
        %181 = sbr.rel (%p179) target = $region28
      $region27: #{attention_forward.1} parent=5 // pred_region
        // Predicated region
        $region29: #{attention_forward.1} parent=27 // pred_check
          %p182 = pneg %p37
        $region30: #{attention_forward.1} parent=27 // pred_check_branch
          %184 = sbr.rel (%p182) target = $region32
        $region31: #{attention_forward.1} parent=27 // pred_region
          %s185 = sand.u32 %s27, 1
          %s186 = scalar_lea.sflag [#allocation3], %s185
          %s187 = sand.u32 %s27, 1
          %s188 = smul.addr %s187, 32
          %s189 = scalar_lea.vmem [#allocation2], %s188
          %191 = vsyncadd %s186, 0
          %s192 = smul.addr %s17, 4
          %s193 = smul.addr %s192, 8
          %s194 = scalar_lea.hbm %s0, %s193
          %s195 = sshll.u32 %s194, 4
          %s196 = int_to_ptr.hbm [resolvable:$true] %s195
          %s197 = sshll.u32 %s189, 4
          %s198 = int_to_ptr.vmem [resolvable:$true] %s197
          %203 = dma.hbm_to_vmem [thread:$0]  %s196, 512, %s198, %s186, 128, 128, 8
        $region32: #{attention_forward.1} parent=27 // pred_fallthru
          _
      $region28: #{attention_forward.1} parent=5 // pred_fallthru
        _
      %p204 = scmp.le.s32.totalorder 1, %s17
      %p205 = scmp.lt.s32.totalorder %s17, 3
      %p206 = pnand %p204, %p205
      %p207 = pneg %p206
      // Predicated region
      $region33: #{attention_forward.1} parent=5 // pred_check
        _
      $region34: #{attention_forward.1} parent=5 // pred_check_branch
        %209 = sbr.rel (%p206) target = $region36
      $region35: #{attention_forward.1} parent=5 // pred_region
        %s210 = ssub.s32 %s17, 1
        %s211 = sand.u32 %s30, 1
        %s212 = scalar_lea.sflag [#allocation3], %s211
        %s213 = sand.u32 %s30, 1
        %s214 = smul.addr %s213, 32
        %s215 = scalar_lea.vmem [#allocation2], %s214
        // Predicated region
        $region37: #{attention_forward.1} parent=35 // pred_check
          %p216 = pneg %p43
        $region38: #{attention_forward.1} parent=35 // pred_check_branch
          %218 = sbr.rel (%p216) target = $region40
        $region39: #{attention_forward.1} parent=35 // pred_region
          %220 = dma.done %s212, 512
        $region40: #{attention_forward.1} parent=35 // pred_fallthru
          _
        // Predicated region
        $region41: #{attention_forward.1} parent=35 // pred_check
          %p221 = pneg %p64
        $region42: #{attention_forward.1} parent=35 // pred_check_branch
          %223 = sbr.rel (%p221) target = $region44
        $region43: #{attention_forward.1} parent=35 // pred_region
          %225 = dma.done [#allocation6], 2048
        $region44: #{attention_forward.1} parent=35 // pred_fallthru
          _
        // Predicated region
        $region45: #{attention_forward.1} parent=35 // pred_check
          %p226 = pneg %p85
        $region46: #{attention_forward.1} parent=35 // pred_check_branch
          %228 = sbr.rel (%p226) target = $region48
        $region47: #{attention_forward.1} parent=35 // pred_region
          %230 = dma.done [#allocation6], 1024
        $region48: #{attention_forward.1} parent=35 // pred_fallthru
          _
        %s231 = sand.u32 %s30, 1
        %s232 = scalar_lea.sflag [#allocation3], %s231
        %s233 = sand.u32 %s30, 1
        %s234 = smul.addr %s233, 32
        %s235 = scalar_lea.vmem [#allocation2], %s234
        %p236 = pneg %p43
        %p237 = pneg %p40
        %p238 = pneg %p64
        %p239 = pneg %p61
        %p240 = pneg %p85
        %p241 = pneg %p82
        %p242 = pneg %p106
        %p243 = pneg %p103
        %p244 = pneg %p132
        %p245 = pneg %p129
        %s246 = sand.u32 %s119, 1
        %s247 = scalar_lea.sflag [#allocation4], %s246
        %s248 = sand.u32 %s119, 1
        %s249 = smul.addr %s248, 32
        %s250 = scalar_lea.vmem [#allocation8], %s249
        %v251 = vld [vmem:[%s215] sm:$0xff]
        %v252 = vld [vmem:[%s215 + $0x8] sm:$0xff]
        %v253 = vld [vmem:[%s215 + $0x10] sm:$0xff]
        %v254 = vld [vmem:[%s215 + $0x18] sm:$0xff]
        %v255 = vld [vmem:[#allocation5] sm:$0xff]
        %v256 = vld [vmem:[#allocation5 + $0x8] sm:$0xff]
        %v257 = vld [vmem:[#allocation5 + $0x10] sm:$0xff]
        %v258 = vld [vmem:[#allocation5 + $0x18] sm:$0xff]
        %v259 = vld [vmem:[#allocation5 + $0x20] sm:$0xff]
        %v260 = vld [vmem:[#allocation5 + $0x28] sm:$0xff]
        %v261 = vld [vmem:[#allocation5 + $0x30] sm:$0xff]
        %v262 = vld [vmem:[#allocation5 + $0x38] sm:$0xff]
        %v263 = vld [vmem:[#allocation5 + $0x40] sm:$0xff]
        %v264 = vld [vmem:[#allocation5 + $0x48] sm:$0xff]
        %v265 = vld [vmem:[#allocation5 + $0x50] sm:$0xff]
        %v266 = vld [vmem:[#allocation5 + $0x58] sm:$0xff]
        %v267 = vld [vmem:[#allocation5 + $0x60] sm:$0xff]
        %v268 = vld [vmem:[#allocation5 + $0x68] sm:$0xff]
        %v269 = vld [vmem:[#allocation5 + $0x70] sm:$0xff]
        %v270 = vld [vmem:[#allocation5 + $0x78] sm:$0xff]
        %vm271 = vcmask 523264
        %v273 = vsel %vm271, %v251, 0
        %v276 = vsel %vm271, %v252, 0
        %v279 = vsel %vm271, %v253, 0
        %v282 = vsel %vm271, %v254, 0
        %284 = vmatpush.msra.mxu0 0.0
        %285 = vmatpush.msra.mxu0 0.0
        %286 = vmatpush.msra.mxu0 0.0
        %287 = vmatpush.msra.mxu0 0.0
        %288 = vmatpush.msra.mxu0 0.0
        %289 = vmatpush.msra.mxu0 0.0
        %290 = vmatpush.msra.mxu0 0.0
        %291 = vmatpush.msra.mxu0 0.0
        %292 = vmatpush.msra.mxu0 %v269
        %293 = vmatpush.msra.mxu0 %v267
        %294 = vmatpush.msra.mxu0 %v265
        %295 = vmatpush.msra.mxu0 %v263
        %296 = vmatpush.msra.mxu0 %v261
        %297 = vmatpush.msra.mxu0 %v259
        %298 = vmatpush.msra.mxu0 %v257
        %299 = vmatpush.msra.mxu0 %v255
        %300 = vmatmul.f32.gmra.mxu0 %v273
        %v301 = vpop.f32.mrf.mxu0
        %v302 = vadd.f32 0.0, %v301
        %303 = vmatmul.f32.gmra.mxu0 %v276
        %v304 = vpop.f32.mrf.mxu0
        %v305 = vadd.f32 0.0, %v304
        %306 = vmatmul.f32.gmra.mxu0 %v279
        %v307 = vpop.f32.mrf.mxu0
        %v308 = vadd.f32 0.0, %v307
        %309 = vmatmul.f32.gmra.mxu0 %v282
        %v310 = vpop.f32.mrf.mxu0
        %v311 = vadd.f32 0.0, %v310
        %312 = vdwg.mxu0
        %313 = vmatpush.msra.mxu0 0.0
        %314 = vmatpush.msra.mxu0 0.0
        %315 = vmatpush.msra.mxu0 0.0
        %316 = vmatpush.msra.mxu0 0.0
        %317 = vmatpush.msra.mxu0 0.0
        %318 = vmatpush.msra.mxu0 0.0
        %319 = vmatpush.msra.mxu0 0.0
        %320 = vmatpush.msra.mxu0 0.0
        %321 = vmatpush.msra.mxu0 %v270
        %322 = vmatpush.msra.mxu0 %v268
        %323 = vmatpush.msra.mxu0 %v266
        %324 = vmatpush.msra.mxu0 %v264
        %325 = vmatpush.msra.mxu0 %v262
        %326 = vmatpush.msra.mxu0 %v260
        %327 = vmatpush.msra.mxu0 %v258
        %328 = vmatpush.msra.mxu0 %v256
        %329 = vmatmul.f32.gmra.mxu0 %v273
        %v330 = vpop.f32.mrf.mxu0
        %v331 = vadd.f32 0.0, %v330
        %332 = vmatmul.f32.gmra.mxu0 %v276
        %v333 = vpop.f32.mrf.mxu0
        %v334 = vadd.f32 0.0, %v333
        %335 = vmatmul.f32.gmra.mxu0 %v279
        %v336 = vpop.f32.mrf.mxu0
        %v337 = vadd.f32 0.0, %v336
        %338 = vmatmul.f32.gmra.mxu0 %v282
        %v339 = vpop.f32.mrf.mxu0
        %v340 = vadd.f32 0.0, %v339
        %341 = vdwg.mxu0
        %v342 = vlaneseq
        %v343 = vshrl.u32 %v342, 7
        %v344 = vadd.s32 %v343, 8
        %v345 = vadd.s32 %v343, 16
        %v346 = vadd.s32 %v343, 24
        %v347 = vlaneseq
        %v348 = vand.u32 %v347, 127
        %vm349 = vcmp.ge.s32.totalorder %v343, 16
        %vm350 = vcmp.ge.s32.totalorder %v344, 16
        %vm351 = vcmp.ge.s32.totalorder %v345, 16
        %vm352 = vcmp.ge.s32.totalorder %v346, 16
        %vm353 = vcmp.lt.s32.totalorder %v348, 16
        %vm354 = vmor %vm349, %vm353
        %vm355 = vmor %vm350, %vm353
        %vm356 = vmor %vm351, %vm353
        %vm357 = vmor %vm352, %vm353
        %v358 = vsel %vm354, 0.0, -1e+30
        %v359 = vsel %vm355, 0.0, -1e+30
        %v360 = vsel %vm356, 0.0, -1e+30
        %v361 = vsel %vm357, 0.0, -1e+30
        %366 = vrot.lane.b32.xlu0 %v302, 64
        %v367 = vpop.permute.xlu0 %366
        %368 = vrot.lane.b32.xlu0 %v305, 64
        %v369 = vpop.permute.xlu0 %368
        %370 = vrot.lane.b32.xlu0 %v308, 64
        %v371 = vpop.permute.xlu0 %370
        %372 = vrot.lane.b32.xlu0 %v311, 64
        %v373 = vpop.permute.xlu0 %372
        %vm374 = vcmask 64512
        %v375 = vsel %vm374, %v302, 0
        %v377 = vsel %vm374, %v305, 0
        %v379 = vsel %vm374, %v308, 0
        %v381 = vsel %vm374, %v311, 0
        %v383 = vsel %vm374, %v367, 0
        %v385 = vsel %vm374, %v369, 0
        %v387 = vsel %vm374, %v371, 0
        %v389 = vsel %vm374, %v373, 0
        %391 = vmatpush.xpose.msra.mxu0 0.0
        %392 = vmatpush.xpose.msra.mxu0 0.0
        %393 = vmatpush.xpose.msra.mxu0 0.0
        %394 = vmatpush.xpose.msra.mxu0 0.0
        %395 = vmatpush.xpose.msra.mxu0 0.0
        %396 = vmatpush.xpose.msra.mxu0 0.0
        %397 = vmatpush.xpose.msra.mxu0 0.0
        %398 = vmatpush.xpose.msra.mxu0 0.0
        %399 = vmatpush.xpose.msra.mxu0 0.0
        %400 = vmatpush.xpose.msra.mxu0 0.0
        %401 = vmatpush.xpose.msra.mxu0 0.0
        %402 = vmatpush.xpose.msra.mxu0 0.0
        %403 = vmatpush.xpose.msra.mxu0 %v389
        %404 = vmatpush.xpose.msra.mxu0 %v387
        %405 = vmatpush.xpose.msra.mxu0 %v385
        %406 = vmatpush.xpose.msra.mxu0 %v383
        %407 = vmatmul.f32.gmra.mxu0 %v375
        %v408 = vpop.f32.mrf.mxu0
        %v409 = vadd.f32 %v358, %v408
        %410 = vmatmul.f32.gmra.mxu0 %v377
        %v411 = vpop.f32.mrf.mxu0
        %v412 = vadd.f32 %v359, %v411
        %413 = vmatmul.f32.gmra.mxu0 %v379
        %v414 = vpop.f32.mrf.mxu0
        %v415 = vadd.f32 %v360, %v414
        %416 = vmatmul.f32.gmra.mxu0 %v381
        %v417 = vpop.f32.mrf.mxu0
        %v418 = vadd.f32 %v361, %v417
        %419 = vdwg.mxu0
        %vm420 = vcmask 261120
        %v421 = vsel %vm420, %v409, -inf
        %422 = vmax.xlane.f32.xlu0 %v421
        %v423 = vpop.xlane.xlu0 %422
        %v424 = vsel %vm420, %v412, -inf
        %425 = vmax.xlane.f32.xlu0 %v424
        %v426 = vpop.xlane.xlu0 %425
        %v427 = vsel %vm420, %v415, -inf
        %428 = vmax.xlane.f32.xlu0 %v427
        %v429 = vpop.xlane.xlu0 %428
        %v430 = vsel %vm420, %v418, -inf
        %431 = vmax.xlane.f32.xlu0 %v430
        %v432 = vpop.xlane.xlu0 %431
        %v433 = vsub.f32 %v409, %v423
        %v434 = vsub.f32 %v412, %v426
        %v435 = vsub.f32 %v415, %v429
        %v436 = vsub.f32 %v418, %v432
        %v437 = vmul.f32 %v433, 1.442695
        %v438 = vpow.pop %v437
        %v439 = vmul.f32 %v434, 1.442695
        %v440 = vpow.pop %v439
        %v441 = vmul.f32 %v435, 1.442695
        %v442 = vpow.pop %v441
        %v443 = vmul.f32 %v436, 1.442695
        %v444 = vpow.pop %v443
        %v445 = vsel %vm420, %v438, 0.0
        %446 = vadd.xlane.f32.xlu0 %v445
        %v447 = vpop.xlane.xlu0 %446
        %v448 = vsel %vm420, %v440, 0.0
        %449 = vadd.xlane.f32.xlu0 %v448
        %v450 = vpop.xlane.xlu0 %449
        %v451 = vsel %vm420, %v442, 0.0
        %452 = vadd.xlane.f32.xlu0 %v451
        %v453 = vpop.xlane.xlu0 %452
        %v454 = vsel %vm420, %v444, 0.0
        %455 = vadd.xlane.f32.xlu0 %v454
        %v456 = vpop.xlane.xlu0 %455
        %v457 = vrcp.pop %v447
        %v458 = vmul.f32 %v447, %v457
        %v459 = vsub.f32 1.0, %v458
        %v460 = vmul.f32 %v457, %v459
        %v461 = vadd.f32 %v457, %v460
        %vm462 = vweird.f32 %v447
        %vm463 = vweird.f32 %v457
        %vm464 = vmor %vm462, %vm463
        %v465 = vsel %vm464, %v457, %v461
        %v466 = vand.u32 2147483647, %v447
        %vm467 = vcmp.eq.f32.partialorder %v466, 8.507059e+37
        %v468 = vand.u32 %v447, 2147483648
        %v469 = vor.u32 1.1754944e-38, %v468
        %v470 = vsel %vm467, %v469, %v465
        %v471 = vrcp.pop %v450
        %v472 = vmul.f32 %v450, %v471
        %v473 = vsub.f32 1.0, %v472
        %v474 = vmul.f32 %v471, %v473
        %v475 = vadd.f32 %v471, %v474
        %vm476 = vweird.f32 %v450
        %vm477 = vweird.f32 %v471
        %vm478 = vmor %vm476, %vm477
        %v479 = vsel %vm478, %v471, %v475
        %v480 = vand.u32 2147483647, %v450
        %vm481 = vcmp.eq.f32.partialorder %v480, 8.507059e+37
        %v482 = vand.u32 %v450, 2147483648
        %v483 = vor.u32 1.1754944e-38, %v482
        %v484 = vsel %vm481, %v483, %v479
        %v485 = vrcp.pop %v453
        %v486 = vmul.f32 %v453, %v485
        %v487 = vsub.f32 1.0, %v486
        %v488 = vmul.f32 %v485, %v487
        %v489 = vadd.f32 %v485, %v488
        %vm490 = vweird.f32 %v453
        %vm491 = vweird.f32 %v485
        %vm492 = vmor %vm490, %vm491
        %v493 = vsel %vm492, %v485, %v489
        %v494 = vand.u32 2147483647, %v453
        %vm495 = vcmp.eq.f32.partialorder %v494, 8.507059e+37
        %v496 = vand.u32 %v453, 2147483648
        %v497 = vor.u32 1.1754944e-38, %v496
        %v498 = vsel %vm495, %v497, %v493
        %v499 = vrcp.pop %v456
        %v500 = vmul.f32 %v456, %v499
        %v501 = vsub.f32 1.0, %v500
        %v502 = vmul.f32 %v499, %v501
        %v503 = vadd.f32 %v499, %v502
        %vm504 = vweird.f32 %v456
        %vm505 = vweird.f32 %v499
        %vm506 = vmor %vm504, %vm505
        %v507 = vsel %vm506, %v499, %v503
        %v508 = vand.u32 2147483647, %v456
        %vm509 = vcmp.eq.f32.partialorder %v508, 8.507059e+37
        %v510 = vand.u32 %v456, 2147483648
        %v511 = vor.u32 1.1754944e-38, %v510
        %v512 = vsel %vm509, %v511, %v507
        %v513 = vmul.f32 %v438, %v470
        %v514 = vmul.f32 %v440, %v484
        %v515 = vmul.f32 %v442, %v498
        %v516 = vmul.f32 %v444, %v512
        %v518 = vsel %vm420, %v513, 0
        %v521 = vsel %vm420, %v514, 0
        %v524 = vsel %vm420, %v515, 0
        %v527 = vsel %vm420, %v516, 0
        %529 = vmatpush.msra.mxu0 0.0
        %530 = vmatpush.msra.mxu0 0.0
        %531 = vmatpush.msra.mxu0 0.0
        %532 = vmatpush.msra.mxu0 0.0
        %533 = vmatpush.msra.mxu0 0.0
        %534 = vmatpush.msra.mxu0 0.0
        %535 = vmatpush.msra.mxu0 0.0
        %536 = vmatpush.msra.mxu0 0.0
        %537 = vmatpush.msra.mxu0 0.0
        %538 = vmatpush.msra.mxu0 0.0
        %539 = vmatpush.msra.mxu0 0.0
        %540 = vmatpush.msra.mxu0 0.0
        %541 = vmatpush.msra.mxu0 %v340
        %542 = vmatpush.msra.mxu0 %v337
        %543 = vmatpush.msra.mxu0 %v334
        %544 = vmatpush.msra.mxu0 %v331
        %545 = vmatmul.f32.gmra.mxu0 %v518
        %v546 = vpop.f32.mrf.mxu0
        %v547 = vadd.f32 0.0, %v546
        %548 = vmatmul.f32.gmra.mxu0 %v521
        %v549 = vpop.f32.mrf.mxu0
        %v550 = vadd.f32 0.0, %v549
        %551 = vmatmul.f32.gmra.mxu0 %v524
        %v552 = vpop.f32.mrf.mxu0
        %v553 = vadd.f32 0.0, %v552
        %554 = vmatmul.f32.gmra.mxu0 %v527
        %v555 = vpop.f32.mrf.mxu0
        %v556 = vadd.f32 0.0, %v555
        %557 = vdwg.mxu0
        %v558 = vld [vmem:[#allocation7] sm:$0xff]
        %559 = vrot.lane.b32.xlu0 %v302, 120
        %v560 = vpop.permute.xlu0 %559
        %561 = vrot.lane.b32.xlu0 %v305, 120
        %v562 = vpop.permute.xlu0 %561
        %563 = vrot.lane.b32.xlu0 %v308, 120
        %v564 = vpop.permute.xlu0 %563
        %565 = vrot.lane.b32.xlu0 %v311, 120
        %v566 = vpop.permute.xlu0 %565
        %567 = vrot.lane.b32.xlu0 %v302, 56
        %v568 = vpop.permute.xlu0 %567
        %569 = vrot.lane.b32.xlu0 %v305, 56
        %v570 = vpop.permute.xlu0 %569
        %571 = vrot.lane.b32.xlu0 %v308, 56
        %v572 = vpop.permute.xlu0 %571
        %573 = vrot.lane.b32.xlu0 %v311, 56
        %v574 = vpop.permute.xlu0 %573
        %v575 = vsel %vm374, %v560, 0
        %v577 = vsel %vm374, %v562, 0
        %v579 = vsel %vm374, %v564, 0
        %v581 = vsel %vm374, %v566, 0
        %v583 = vsel %vm374, %v568, 0
        %v585 = vsel %vm374, %v570, 0
        %v587 = vsel %vm374, %v572, 0
        %v589 = vsel %vm374, %v574, 0
        %591 = vmatpush.xpose.msra.mxu0 0.0
        %592 = vmatpush.xpose.msra.mxu0 0.0
        %593 = vmatpush.xpose.msra.mxu0 0.0
        %594 = vmatpush.xpose.msra.mxu0 0.0
        %595 = vmatpush.xpose.msra.mxu0 0.0
        %596 = vmatpush.xpose.msra.mxu0 0.0
        %597 = vmatpush.xpose.msra.mxu0 0.0
        %598 = vmatpush.xpose.msra.mxu0 0.0
        %599 = vmatpush.xpose.msra.mxu0 0.0
        %600 = vmatpush.xpose.msra.mxu0 0.0
        %601 = vmatpush.xpose.msra.mxu0 0.0
        %602 = vmatpush.xpose.msra.mxu0 0.0
        %603 = vmatpush.xpose.msra.mxu0 %v589
        %604 = vmatpush.xpose.msra.mxu0 %v587
        %605 = vmatpush.xpose.msra.mxu0 %v585
        %606 = vmatpush.xpose.msra.mxu0 %v583
        %607 = vmatmul.f32.gmra.mxu0 %v575
        %v608 = vpop.f32.mrf.mxu0
        %v609 = vadd.f32 %v358, %v608
        %610 = vmatmul.f32.gmra.mxu0 %v577
        %v611 = vpop.f32.mrf.mxu0
        %v612 = vadd.f32 %v359, %v611
        %613 = vmatmul.f32.gmra.mxu0 %v579
        %v614 = vpop.f32.mrf.mxu0
        %v615 = vadd.f32 %v360, %v614
        %616 = vmatmul.f32.gmra.mxu0 %v581
        %v617 = vpop.f32.mrf.mxu0
        %v618 = vadd.f32 %v361, %v617
        %619 = vdwg.mxu0
        %v620 = vsel %vm420, %v609, -inf
        %621 = vmax.xlane.f32.xlu0 %v620
        %v622 = vpop.xlane.xlu0 %621
        %v623 = vsel %vm420, %v612, -inf
        %624 = vmax.xlane.f32.xlu0 %v623
        %v625 = vpop.xlane.xlu0 %624
        %v626 = vsel %vm420, %v615, -inf
        %627 = vmax.xlane.f32.xlu0 %v626
        %v628 = vpop.xlane.xlu0 %627
        %v629 = vsel %vm420, %v618, -inf
        %630 = vmax.xlane.f32.xlu0 %v629
        %v631 = vpop.xlane.xlu0 %630
        %v632 = vsub.f32 %v609, %v622
        %v633 = vsub.f32 %v612, %v625
        %v634 = vsub.f32 %v615, %v628
        %v635 = vsub.f32 %v618, %v631
        %v636 = vmul.f32 %v632, 1.442695
        %v637 = vpow.pop %v636
        %v638 = vmul.f32 %v633, 1.442695
        %v639 = vpow.pop %v638
        %v640 = vmul.f32 %v634, 1.442695
        %v641 = vpow.pop %v640
        %v642 = vmul.f32 %v635, 1.442695
        %v643 = vpow.pop %v642
        %v644 = vsel %vm420, %v637, 0.0
        %645 = vadd.xlane.f32.xlu0 %v644
        %v646 = vpop.xlane.xlu0 %645
        %v647 = vsel %vm420, %v639, 0.0
        %648 = vadd.xlane.f32.xlu0 %v647
        %v649 = vpop.xlane.xlu0 %648
        %v650 = vsel %vm420, %v641, 0.0
        %651 = vadd.xlane.f32.xlu0 %v650
        %v652 = vpop.xlane.xlu0 %651
        %v653 = vsel %vm420, %v643, 0.0
        %654 = vadd.xlane.f32.xlu0 %v653
        %v655 = vpop.xlane.xlu0 %654
        %v656 = vrcp.pop %v646
        %v657 = vmul.f32 %v646, %v656
        %v658 = vsub.f32 1.0, %v657
        %v659 = vmul.f32 %v656, %v658
        %v660 = vadd.f32 %v656, %v659
        %vm661 = vweird.f32 %v646
        %vm662 = vweird.f32 %v656
        %vm663 = vmor %vm661, %vm662
        %v664 = vsel %vm663, %v656, %v660
        %v665 = vand.u32 2147483647, %v646
        %vm666 = vcmp.eq.f32.partialorder %v665, 8.507059e+37
        %v667 = vand.u32 %v646, 2147483648
        %v668 = vor.u32 1.1754944e-38, %v667
        %v669 = vsel %vm666, %v668, %v664
        %v670 = vrcp.pop %v649
        %v671 = vmul.f32 %v649, %v670
        %v672 = vsub.f32 1.0, %v671
        %v673 = vmul.f32 %v670, %v672
        %v674 = vadd.f32 %v670, %v673
        %vm675 = vweird.f32 %v649
        %vm676 = vweird.f32 %v670
        %vm677 = vmor %vm675, %vm676
        %v678 = vsel %vm677, %v670, %v674
        %v679 = vand.u32 2147483647, %v649
        %vm680 = vcmp.eq.f32.partialorder %v679, 8.507059e+37
        %v681 = vand.u32 %v649, 2147483648
        %v682 = vor.u32 1.1754944e-38, %v681
        %v683 = vsel %vm680, %v682, %v678
        %v684 = vrcp.pop %v652
        %v685 = vmul.f32 %v652, %v684
        %v686 = vsub.f32 1.0, %v685
        %v687 = vmul.f32 %v684, %v686
        %v688 = vadd.f32 %v684, %v687
        %vm689 = vweird.f32 %v652
        %vm690 = vweird.f32 %v684
        %vm691 = vmor %vm689, %vm690
        %v692 = vsel %vm691, %v684, %v688
        %v693 = vand.u32 2147483647, %v652
        %vm694 = vcmp.eq.f32.partialorder %v693, 8.507059e+37
        %v695 = vand.u32 %v652, 2147483648
        %v696 = vor.u32 1.1754944e-38, %v695
        %v697 = vsel %vm694, %v696, %v692
        %v698 = vrcp.pop %v655
        %v699 = vmul.f32 %v655, %v698
        %v700 = vsub.f32 1.0, %v699
        %v701 = vmul.f32 %v698, %v700
        %v702 = vadd.f32 %v698, %v701
        %vm703 = vweird.f32 %v655
        %vm704 = vweird.f32 %v698
        %vm705 = vmor %vm703, %vm704
        %v706 = vsel %vm705, %v698, %v702
        %v707 = vand.u32 2147483647, %v655
        %vm708 = vcmp.eq.f32.partialorder %v707, 8.507059e+37
        %v709 = vand.u32 %v655, 2147483648
        %v710 = vor.u32 1.1754944e-38, %v709
        %v711 = vsel %vm708, %v710, %v706
        %v712 = vmul.f32 %v637, %v669
        %v713 = vmul.f32 %v639, %v683
        %v714 = vmul.f32 %v641, %v697
        %v715 = vmul.f32 %v643, %v711
        %720 = vrot.lane.b32.xlu0 %v331, 120
        %v721 = vpop.permute.xlu0 %720
        %722 = vrot.lane.b32.xlu0 %v334, 120
        %v723 = vpop.permute.xlu0 %722
        %724 = vrot.lane.b32.xlu0 %v337, 120
        %v725 = vpop.permute.xlu0 %724
        %726 = vrot.lane.b32.xlu0 %v340, 120
        %v727 = vpop.permute.xlu0 %726
        %v733 = vsel %vm420, %v712, 0
        %v736 = vsel %vm420, %v713, 0
        %v739 = vsel %vm420, %v714, 0
        %v742 = vsel %vm420, %v715, 0
        %744 = vmatpush.msra.mxu0 0.0
        %745 = vmatpush.msra.mxu0 0.0
        %746 = vmatpush.msra.mxu0 0.0
        %747 = vmatpush.msra.mxu0 0.0
        %748 = vmatpush.msra.mxu0 0.0
        %749 = vmatpush.msra.mxu0 0.0
        %750 = vmatpush.msra.mxu0 0.0
        %751 = vmatpush.msra.mxu0 0.0
        %752 = vmatpush.msra.mxu0 0.0
        %753 = vmatpush.msra.mxu0 0.0
        %754 = vmatpush.msra.mxu0 0.0
        %755 = vmatpush.msra.mxu0 0.0
        %756 = vmatpush.msra.mxu0 %v727
        %757 = vmatpush.msra.mxu0 %v725
        %758 = vmatpush.msra.mxu0 %v723
        %759 = vmatpush.msra.mxu0 %v721
        %760 = vmatmul.f32.gmra.mxu0 %v733
        %v761 = vpop.f32.mrf.mxu0
        %v762 = vadd.f32 0.0, %v761
        %763 = vmatmul.f32.gmra.mxu0 %v736
        %v764 = vpop.f32.mrf.mxu0
        %v765 = vadd.f32 0.0, %v764
        %766 = vmatmul.f32.gmra.mxu0 %v739
        %v767 = vpop.f32.mrf.mxu0
        %v768 = vadd.f32 0.0, %v767
        %769 = vmatmul.f32.gmra.mxu0 %v742
        %v770 = vpop.f32.mrf.mxu0
        %v771 = vadd.f32 0.0, %v770
        %772 = vdwg.mxu0
        %v773 = vld [vmem:[#allocation7 + $0x8] sm:$0xff]
        %v775 = vsel %vm374, %v762, 0
        %v778 = vsel %vm374, %v765, 0
        %v781 = vsel %vm374, %v768, 0
        %v784 = vsel %vm374, %v771, 0
        %786 = vmatpush.msra.mxu0 0.0
        %787 = vmatpush.msra.mxu0 0.0
        %788 = vmatpush.msra.mxu0 0.0
        %789 = vmatpush.msra.mxu0 0.0
        %790 = vmatpush.msra.mxu0 0.0
        %791 = vmatpush.msra.mxu0 0.0
        %792 = vmatpush.msra.mxu0 0.0
        %793 = vmatpush.msra.mxu0 0.0
        %794 = vmatpush.msra.mxu0 0.0
        %795 = vmatpush.msra.mxu0 0.0
        %796 = vmatpush.msra.mxu0 0.0
        %797 = vmatpush.msra.mxu0 0.0
        %798 = vmatpush.msra.mxu0 0.0
        %799 = vmatpush.msra.mxu0 0.0
        %800 = vmatpush.msra.mxu0 0.0
        %801 = vmatpush.msra.mxu0 %v773
        %802 = vmatmul.f32.gmra.mxu0 %v775
        %v803 = vpop.f32.mrf.mxu0
        %v804 = vadd.f32 0.0, %v803
        %805 = vmatmul.f32.gmra.mxu0 %v778
        %v806 = vpop.f32.mrf.mxu0
        %v807 = vadd.f32 0.0, %v806
        %808 = vmatmul.f32.gmra.mxu0 %v781
        %v809 = vpop.f32.mrf.mxu0
        %v810 = vadd.f32 0.0, %v809
        %811 = vmatmul.f32.gmra.mxu0 %v784
        %v812 = vpop.f32.mrf.mxu0
        %v813 = vadd.f32 0.0, %v812
        %814 = vdwg.mxu0
        %v816 = vsel %vm374, %v547, 0
        %v819 = vsel %vm374, %v550, 0
        %v822 = vsel %vm374, %v553, 0
        %v825 = vsel %vm374, %v556, 0
        %827 = vmatpush.msra.mxu0 0.0
        %828 = vmatpush.msra.mxu0 0.0
        %829 = vmatpush.msra.mxu0 0.0
        %830 = vmatpush.msra.mxu0 0.0
        %831 = vmatpush.msra.mxu0 0.0
        %832 = vmatpush.msra.mxu0 0.0
        %833 = vmatpush.msra.mxu0 0.0
        %834 = vmatpush.msra.mxu0 0.0
        %835 = vmatpush.msra.mxu0 0.0
        %836 = vmatpush.msra.mxu0 0.0
        %837 = vmatpush.msra.mxu0 0.0
        %838 = vmatpush.msra.mxu0 0.0
        %839 = vmatpush.msra.mxu0 0.0
        %840 = vmatpush.msra.mxu0 0.0
        %841 = vmatpush.msra.mxu0 0.0
        %842 = vmatpush.msra.mxu0 %v558
        %843 = vmatmul.f32.gmra.mxu0 %v816
        %v844 = vpop.f32.mrf.mxu0
        %v845 = vadd.f32 %v804, %v844
        %846 = vmatmul.f32.gmra.mxu0 %v819
        %v847 = vpop.f32.mrf.mxu0
        %v848 = vadd.f32 %v807, %v847
        %849 = vmatmul.f32.gmra.mxu0 %v822
        %v850 = vpop.f32.mrf.mxu0
        %v851 = vadd.f32 %v810, %v850
        %852 = vmatmul.f32.gmra.mxu0 %v825
        %v853 = vpop.f32.mrf.mxu0
        %v854 = vadd.f32 %v813, %v853
        %855 = vdwg.mxu0
        %856 = vrot.lane.b32.xlu0 %v302, 112
        %v857 = vpop.permute.xlu0 %856
        %858 = vrot.lane.b32.xlu0 %v305, 112
        %v859 = vpop.permute.xlu0 %858
        %860 = vrot.lane.b32.xlu0 %v308, 112
        %v861 = vpop.permute.xlu0 %860
        %862 = vrot.lane.b32.xlu0 %v311, 112
        %v863 = vpop.permute.xlu0 %862
        %864 = vrot.lane.b32.xlu0 %v302, 48
        %v865 = vpop.permute.xlu0 %864
        %866 = vrot.lane.b32.xlu0 %v305, 48
        %v867 = vpop.permute.xlu0 %866
        %868 = vrot.lane.b32.xlu0 %v308, 48
        %v869 = vpop.permute.xlu0 %868
        %870 = vrot.lane.b32.xlu0 %v311, 48
        %v871 = vpop.permute.xlu0 %870
        %v872 = vsel %vm374, %v857, 0
        %v874 = vsel %vm374, %v859, 0
        %v876 = vsel %vm374, %v861, 0
        %v878 = vsel %vm374, %v863, 0
        %v880 = vsel %vm374, %v865, 0
        %v882 = vsel %vm374, %v867, 0
        %v884 = vsel %vm374, %v869, 0
        %v886 = vsel %vm374, %v871, 0
        %888 = vmatpush.xpose.msra.mxu0 0.0
        %889 = vmatpush.xpose.msra.mxu0 0.0
        %890 = vmatpush.xpose.msra.mxu0 0.0
        %891 = vmatpush.xpose.msra.mxu0 0.0
        %892 = vmatpush.xpose.msra.mxu0 0.0
        %893 = vmatpush.xpose.msra.mxu0 0.0
        %894 = vmatpush.xpose.msra.mxu0 0.0
        %895 = vmatpush.xpose.msra.mxu0 0.0
        %896 = vmatpush.xpose.msra.mxu0 0.0
        %897 = vmatpush.xpose.msra.mxu0 0.0
        %898 = vmatpush.xpose.msra.mxu0 0.0
        %899 = vmatpush.xpose.msra.mxu0 0.0
        %900 = vmatpush.xpose.msra.mxu0 %v886
        %901 = vmatpush.xpose.msra.mxu0 %v884
        %902 = vmatpush.xpose.msra.mxu0 %v882
        %903 = vmatpush.xpose.msra.mxu0 %v880
        %904 = vmatmul.f32.gmra.mxu0 %v872
        %v905 = vpop.f32.mrf.mxu0
        %v906 = vadd.f32 %v358, %v905
        %907 = vmatmul.f32.gmra.mxu0 %v874
        %v908 = vpop.f32.mrf.mxu0
        %v909 = vadd.f32 %v359, %v908
        %910 = vmatmul.f32.gmra.mxu0 %v876
        %v911 = vpop.f32.mrf.mxu0
        %v912 = vadd.f32 %v360, %v911
        %913 = vmatmul.f32.gmra.mxu0 %v878
        %v914 = vpop.f32.mrf.mxu0
        %v915 = vadd.f32 %v361, %v914
        %916 = vdwg.mxu0
        %v917 = vsel %vm420, %v906, -inf
        %918 = vmax.xlane.f32.xlu0 %v917
        %v919 = vpop.xlane.xlu0 %918
        %v920 = vsel %vm420, %v909, -inf
        %921 = vmax.xlane.f32.xlu0 %v920
        %v922 = vpop.xlane.xlu0 %921
        %v923 = vsel %vm420, %v912, -inf
        %924 = vmax.xlane.f32.xlu0 %v923
        %v925 = vpop.xlane.xlu0 %924
        %v926 = vsel %vm420, %v915, -inf
        %927 = vmax.xlane.f32.xlu0 %v926
        %v928 = vpop.xlane.xlu0 %927
        %v929 = vsub.f32 %v906, %v919
        %v930 = vsub.f32 %v909, %v922
        %v931 = vsub.f32 %v912, %v925
        %v932 = vsub.f32 %v915, %v928
        %v933 = vmul.f32 %v929, 1.442695
        %v934 = vpow.pop %v933
        %v935 = vmul.f32 %v930, 1.442695
        %v936 = vpow.pop %v935
        %v937 = vmul.f32 %v931, 1.442695
        %v938 = vpow.pop %v937
        %v939 = vmul.f32 %v932, 1.442695
        %v940 = vpow.pop %v939
        %v941 = vsel %vm420, %v934, 0.0
        %942 = vadd.xlane.f32.xlu0 %v941
        %v943 = vpop.xlane.xlu0 %942
        %v944 = vsel %vm420, %v936, 0.0
        %945 = vadd.xlane.f32.xlu0 %v944
        %v946 = vpop.xlane.xlu0 %945
        %v947 = vsel %vm420, %v938, 0.0
        %948 = vadd.xlane.f32.xlu0 %v947
        %v949 = vpop.xlane.xlu0 %948
        %v950 = vsel %vm420, %v940, 0.0
        %951 = vadd.xlane.f32.xlu0 %v950
        %v952 = vpop.xlane.xlu0 %951
        %v953 = vrcp.pop %v943
        %v954 = vmul.f32 %v943, %v953
        %v955 = vsub.f32 1.0, %v954
        %v956 = vmul.f32 %v953, %v955
        %v957 = vadd.f32 %v953, %v956
        %vm958 = vweird.f32 %v943
        %vm959 = vweird.f32 %v953
        %vm960 = vmor %vm958, %vm959
        %v961 = vsel %vm960, %v953, %v957
        %v962 = vand.u32 2147483647, %v943
        %vm963 = vcmp.eq.f32.partialorder %v962, 8.507059e+37
        %v964 = vand.u32 %v943, 2147483648
        %v965 = vor.u32 1.1754944e-38, %v964
        %v966 = vsel %vm963, %v965, %v961
        %v967 = vrcp.pop %v946
        %v968 = vmul.f32 %v946, %v967
        %v969 = vsub.f32 1.0, %v968
        %v970 = vmul.f32 %v967, %v969
        %v971 = vadd.f32 %v967, %v970
        %vm972 = vweird.f32 %v946
        %vm973 = vweird.f32 %v967
        %vm974 = vmor %vm972, %vm973
        %v975 = vsel %vm974, %v967, %v971
        %v976 = vand.u32 2147483647, %v946
        %vm977 = vcmp.eq.f32.partialorder %v976, 8.507059e+37
        %v978 = vand.u32 %v946, 2147483648
        %v979 = vor.u32 1.1754944e-38, %v978
        %v980 = vsel %vm977, %v979, %v975
        %v981 = vrcp.pop %v949
        %v982 = vmul.f32 %v949, %v981
        %v983 = vsub.f32 1.0, %v982
        %v984 = vmul.f32 %v981, %v983
        %v985 = vadd.f32 %v981, %v984
        %vm986 = vweird.f32 %v949
        %vm987 = vweird.f32 %v981
        %vm988 = vmor %vm986, %vm987
        %v989 = vsel %vm988, %v981, %v985
        %v990 = vand.u32 2147483647, %v949
        %vm991 = vcmp.eq.f32.partialorder %v990, 8.507059e+37
        %v992 = vand.u32 %v949, 2147483648
        %v993 = vor.u32 1.1754944e-38, %v992
        %v994 = vsel %vm991, %v993, %v989
        %v995 = vrcp.pop %v952
        %v996 = vmul.f32 %v952, %v995
        %v997 = vsub.f32 1.0, %v996
        %v998 = vmul.f32 %v995, %v997
        %v999 = vadd.f32 %v995, %v998
        %vm1000 = vweird.f32 %v952
        %vm1001 = vweird.f32 %v995
        %vm1002 = vmor %vm1000, %vm1001
        %v1003 = vsel %vm1002, %v995, %v999
        %v1004 = vand.u32 2147483647, %v952
        %vm1005 = vcmp.eq.f32.partialorder %v1004, 8.507059e+37
        %v1006 = vand.u32 %v952, 2147483648
        %v1007 = vor.u32 1.1754944e-38, %v1006
        %v1008 = vsel %vm1005, %v1007, %v1003
        %v1009 = vmul.f32 %v934, %v966
        %v1010 = vmul.f32 %v936, %v980
        %v1011 = vmul.f32 %v938, %v994
        %v1012 = vmul.f32 %v940, %v1008
        %1013 = vrot.lane.b32.xlu0 %v331, 112
        %v1014 = vpop.permute.xlu0 %1013
        %1015 = vrot.lane.b32.xlu0 %v334, 112
        %v1016 = vpop.permute.xlu0 %1015
        %1017 = vrot.lane.b32.xlu0 %v337, 112
        %v1018 = vpop.permute.xlu0 %1017
        %1019 = vrot.lane.b32.xlu0 %v340, 112
        %v1020 = vpop.permute.xlu0 %1019
        %v1026 = vsel %vm420, %v1009, 0
        %v1029 = vsel %vm420, %v1010, 0
        %v1032 = vsel %vm420, %v1011, 0
        %v1035 = vsel %vm420, %v1012, 0
        %1037 = vmatpush.msra.mxu0 0.0
        %1038 = vmatpush.msra.mxu0 0.0
        %1039 = vmatpush.msra.mxu0 0.0
        %1040 = vmatpush.msra.mxu0 0.0
        %1041 = vmatpush.msra.mxu0 0.0
        %1042 = vmatpush.msra.mxu0 0.0
        %1043 = vmatpush.msra.mxu0 0.0
        %1044 = vmatpush.msra.mxu0 0.0
        %1045 = vmatpush.msra.mxu0 0.0
        %1046 = vmatpush.msra.mxu0 0.0
        %1047 = vmatpush.msra.mxu0 0.0
        %1048 = vmatpush.msra.mxu0 0.0
        %1049 = vmatpush.msra.mxu0 %v1020
        %1050 = vmatpush.msra.mxu0 %v1018
        %1051 = vmatpush.msra.mxu0 %v1016
        %1052 = vmatpush.msra.mxu0 %v1014
        %1053 = vmatmul.f32.gmra.mxu0 %v1026
        %v1054 = vpop.f32.mrf.mxu0
        %v1055 = vadd.f32 0.0, %v1054
        %1056 = vmatmul.f32.gmra.mxu0 %v1029
        %v1057 = vpop.f32.mrf.mxu0
        %v1058 = vadd.f32 0.0, %v1057
        %1059 = vmatmul.f32.gmra.mxu0 %v1032
        %v1060 = vpop.f32.mrf.mxu0
        %v1061 = vadd.f32 0.0, %v1060
        %1062 = vmatmul.f32.gmra.mxu0 %v1035
        %v1063 = vpop.f32.mrf.mxu0
        %v1064 = vadd.f32 0.0, %v1063
        %1065 = vdwg.mxu0
        %v1066 = vld [vmem:[#allocation7 + $0x10] sm:$0xff]
        %v1068 = vsel %vm374, %v1055, 0
        %v1071 = vsel %vm374, %v1058, 0
        %v1074 = vsel %vm374, %v1061, 0
        %v1077 = vsel %vm374, %v1064, 0
        %1079 = vmatpush.msra.mxu0 0.0
        %1080 = vmatpush.msra.mxu0 0.0
        %1081 = vmatpush.msra.mxu0 0.0
        %1082 = vmatpush.msra.mxu0 0.0
        %1083 = vmatpush.msra.mxu0 0.0
        %1084 = vmatpush.msra.mxu0 0.0
        %1085 = vmatpush.msra.mxu0 0.0
        %1086 = vmatpush.msra.mxu0 0.0
        %1087 = vmatpush.msra.mxu0 0.0
        %1088 = vmatpush.msra.mxu0 0.0
        %1089 = vmatpush.msra.mxu0 0.0
        %1090 = vmatpush.msra.mxu0 0.0
        %1091 = vmatpush.msra.mxu0 0.0
        %1092 = vmatpush.msra.mxu0 0.0
        %1093 = vmatpush.msra.mxu0 0.0
        %1094 = vmatpush.msra.mxu0 %v1066
        %1095 = vmatmul.f32.gmra.mxu0 %v1068
        %v1096 = vpop.f32.mrf.mxu0
        %v1097 = vadd.f32 0.0, %v1096
        %1098 = vmatmul.f32.gmra.mxu0 %v1071
        %v1099 = vpop.f32.mrf.mxu0
        %v1100 = vadd.f32 0.0, %v1099
        %1101 = vmatmul.f32.gmra.mxu0 %v1074
        %v1102 = vpop.f32.mrf.mxu0
        %v1103 = vadd.f32 0.0, %v1102
        %1104 = vmatmul.f32.gmra.mxu0 %v1077
        %v1105 = vpop.f32.mrf.mxu0
        %v1106 = vadd.f32 0.0, %v1105
        %1107 = vdwg.mxu0
        %v1108 = vadd.f32 %v845, %v1097
        %v1109 = vadd.f32 %v848, %v1100
        %v1110 = vadd.f32 %v851, %v1103
        %v1111 = vadd.f32 %v854, %v1106
        %1112 = vrot.lane.b32.xlu0 %v302, 104
        %v1113 = vpop.permute.xlu0 %1112
        %1114 = vrot.lane.b32.xlu0 %v305, 104
        %v1115 = vpop.permute.xlu0 %1114
        %1116 = vrot.lane.b32.xlu0 %v308, 104
        %v1117 = vpop.permute.xlu0 %1116
        %1118 = vrot.lane.b32.xlu0 %v311, 104
        %v1119 = vpop.permute.xlu0 %1118
        %1120 = vrot.lane.b32.xlu0 %v302, 40
        %v1121 = vpop.permute.xlu0 %1120
        %1122 = vrot.lane.b32.xlu0 %v305, 40
        %v1123 = vpop.permute.xlu0 %1122
        %1124 = vrot.lane.b32.xlu0 %v308, 40
        %v1125 = vpop.permute.xlu0 %1124
        %1126 = vrot.lane.b32.xlu0 %v311, 40
        %v1127 = vpop.permute.xlu0 %1126
        %v1128 = vsel %vm374, %v1113, 0
        %v1130 = vsel %vm374, %v1115, 0
        %v1132 = vsel %vm374, %v1117, 0
        %v1134 = vsel %vm374, %v1119, 0
        %v1136 = vsel %vm374, %v1121, 0
        %v1138 = vsel %vm374, %v1123, 0
        %v1140 = vsel %vm374, %v1125, 0
        %v1142 = vsel %vm374, %v1127, 0
        %1144 = vmatpush.xpose.msra.mxu0 0.0
        %1145 = vmatpush.xpose.msra.mxu0 0.0
        %1146 = vmatpush.xpose.msra.mxu0 0.0
        %1147 = vmatpush.xpose.msra.mxu0 0.0
        %1148 = vmatpush.xpose.msra.mxu0 0.0
        %1149 = vmatpush.xpose.msra.mxu0 0.0
        %1150 = vmatpush.xpose.msra.mxu0 0.0
        %1151 = vmatpush.xpose.msra.mxu0 0.0
        %1152 = vmatpush.xpose.msra.mxu0 0.0
        %1153 = vmatpush.xpose.msra.mxu0 0.0
        %1154 = vmatpush.xpose.msra.mxu0 0.0
        %1155 = vmatpush.xpose.msra.mxu0 0.0
        %1156 = vmatpush.xpose.msra.mxu0 %v1142
        %1157 = vmatpush.xpose.msra.mxu0 %v1140
        %1158 = vmatpush.xpose.msra.mxu0 %v1138
        %1159 = vmatpush.xpose.msra.mxu0 %v1136
        %1160 = vmatmul.f32.gmra.mxu0 %v1128
        %v1161 = vpop.f32.mrf.mxu0
        %v1162 = vadd.f32 %v358, %v1161
        %1163 = vmatmul.f32.gmra.mxu0 %v1130
        %v1164 = vpop.f32.mrf.mxu0
        %v1165 = vadd.f32 %v359, %v1164
        %1166 = vmatmul.f32.gmra.mxu0 %v1132
        %v1167 = vpop.f32.mrf.mxu0
        %v1168 = vadd.f32 %v360, %v1167
        %1169 = vmatmul.f32.gmra.mxu0 %v1134
        %v1170 = vpop.f32.mrf.mxu0
        %v1171 = vadd.f32 %v361, %v1170
        %1172 = vdwg.mxu0
        %v1173 = vsel %vm420, %v1162, -inf
        %1174 = vmax.xlane.f32.xlu0 %v1173
        %v1175 = vpop.xlane.xlu0 %1174
        %v1176 = vsel %vm420, %v1165, -inf
        %1177 = vmax.xlane.f32.xlu0 %v1176
        %v1178 = vpop.xlane.xlu0 %1177
        %v1179 = vsel %vm420, %v1168, -inf
        %1180 = vmax.xlane.f32.xlu0 %v1179
        %v1181 = vpop.xlane.xlu0 %1180
        %v1182 = vsel %vm420, %v1171, -inf
        %1183 = vmax.xlane.f32.xlu0 %v1182
        %v1184 = vpop.xlane.xlu0 %1183
        %v1185 = vsub.f32 %v1162, %v1175
        %v1186 = vsub.f32 %v1165, %v1178
        %v1187 = vsub.f32 %v1168, %v1181
        %v1188 = vsub.f32 %v1171, %v1184
        %v1189 = vmul.f32 %v1185, 1.442695
        %v1190 = vpow.pop %v1189
        %v1191 = vmul.f32 %v1186, 1.442695
        %v1192 = vpow.pop %v1191
        %v1193 = vmul.f32 %v1187, 1.442695
        %v1194 = vpow.pop %v1193
        %v1195 = vmul.f32 %v1188, 1.442695
        %v1196 = vpow.pop %v1195
        %v1197 = vsel %vm420, %v1190, 0.0
        %1198 = vadd.xlane.f32.xlu0 %v1197
        %v1199 = vpop.xlane.xlu0 %1198
        %v1200 = vsel %vm420, %v1192, 0.0
        %1201 = vadd.xlane.f32.xlu0 %v1200
        %v1202 = vpop.xlane.xlu0 %1201
        %v1203 = vsel %vm420, %v1194, 0.0
        %1204 = vadd.xlane.f32.xlu0 %v1203
        %v1205 = vpop.xlane.xlu0 %1204
        %v1206 = vsel %vm420, %v1196, 0.0
        %1207 = vadd.xlane.f32.xlu0 %v1206
        %v1208 = vpop.xlane.xlu0 %1207
        %v1209 = vrcp.pop %v1199
        %v1210 = vmul.f32 %v1199, %v1209
        %v1211 = vsub.f32 1.0, %v1210
        %v1212 = vmul.f32 %v1209, %v1211
        %v1213 = vadd.f32 %v1209, %v1212
        %vm1214 = vweird.f32 %v1199
        %vm1215 = vweird.f32 %v1209
        %vm1216 = vmor %vm1214, %vm1215
        %v1217 = vsel %vm1216, %v1209, %v1213
        %v1218 = vand.u32 2147483647, %v1199
        %vm1219 = vcmp.eq.f32.partialorder %v1218, 8.507059e+37
        %v1220 = vand.u32 %v1199, 2147483648
        %v1221 = vor.u32 1.1754944e-38, %v1220
        %v1222 = vsel %vm1219, %v1221, %v1217
        %v1223 = vrcp.pop %v1202
        %v1224 = vmul.f32 %v1202, %v1223
        %v1225 = vsub.f32 1.0, %v1224
        %v1226 = vmul.f32 %v1223, %v1225
        %v1227 = vadd.f32 %v1223, %v1226
        %vm1228 = vweird.f32 %v1202
        %vm1229 = vweird.f32 %v1223
        %vm1230 = vmor %vm1228, %vm1229
        %v1231 = vsel %vm1230, %v1223, %v1227
        %v1232 = vand.u32 2147483647, %v1202
        %vm1233 = vcmp.eq.f32.partialorder %v1232, 8.507059e+37
        %v1234 = vand.u32 %v1202, 2147483648
        %v1235 = vor.u32 1.1754944e-38, %v1234
        %v1236 = vsel %vm1233, %v1235, %v1231
        %v1237 = vrcp.pop %v1205
        %v1238 = vmul.f32 %v1205, %v1237
        %v1239 = vsub.f32 1.0, %v1238
        %v1240 = vmul.f32 %v1237, %v1239
        %v1241 = vadd.f32 %v1237, %v1240
        %vm1242 = vweird.f32 %v1205
        %vm1243 = vweird.f32 %v1237
        %vm1244 = vmor %vm1242, %vm1243
        %v1245 = vsel %vm1244, %v1237, %v1241
        %v1246 = vand.u32 2147483647, %v1205
        %vm1247 = vcmp.eq.f32.partialorder %v1246, 8.507059e+37
        %v1248 = vand.u32 %v1205, 2147483648
        %v1249 = vor.u32 1.1754944e-38, %v1248
        %v1250 = vsel %vm1247, %v1249, %v1245
        %v1251 = vrcp.pop %v1208
        %v1252 = vmul.f32 %v1208, %v1251
        %v1253 = vsub.f32 1.0, %v1252
        %v1254 = vmul.f32 %v1251, %v1253
        %v1255 = vadd.f32 %v1251, %v1254
        %vm1256 = vweird.f32 %v1208
        %vm1257 = vweird.f32 %v1251
        %vm1258 = vmor %vm1256, %vm1257
        %v1259 = vsel %vm1258, %v1251, %v1255
        %v1260 = vand.u32 2147483647, %v1208
        %vm1261 = vcmp.eq.f32.partialorder %v1260, 8.507059e+37
        %v1262 = vand.u32 %v1208, 2147483648
        %v1263 = vor.u32 1.1754944e-38, %v1262
        %v1264 = vsel %vm1261, %v1263, %v1259
        %v1265 = vmul.f32 %v1190, %v1222
        %v1266 = vmul.f32 %v1192, %v1236
        %v1267 = vmul.f32 %v1194, %v1250
        %v1268 = vmul.f32 %v1196, %v1264
        %1269 = vrot.lane.b32.xlu0 %v331, 104
        %v1270 = vpop.permute.xlu0 %1269
        %1271 = vrot.lane.b32.xlu0 %v334, 104
        %v1272 = vpop.permute.xlu0 %1271
        %1273 = vrot.lane.b32.xlu0 %v337, 104
        %v1274 = vpop.permute.xlu0 %1273
        %1275 = vrot.lane.b32.xlu0 %v340, 104
        %v1276 = vpop.permute.xlu0 %1275
        %v1282 = vsel %vm420, %v1265, 0
        %v1285 = vsel %vm420, %v1266, 0
        %v1288 = vsel %vm420, %v1267, 0
        %v1291 = vsel %vm420, %v1268, 0
        %1293 = vmatpush.msra.mxu0 0.0
        %1294 = vmatpush.msra.mxu0 0.0
        %1295 = vmatpush.msra.mxu0 0.0
        %1296 = vmatpush.msra.mxu0 0.0
        %1297 = vmatpush.msra.mxu0 0.0
        %1298 = vmatpush.msra.mxu0 0.0
        %1299 = vmatpush.msra.mxu0 0.0
        %1300 = vmatpush.msra.mxu0 0.0
        %1301 = vmatpush.msra.mxu0 0.0
        %1302 = vmatpush.msra.mxu0 0.0
        %1303 = vmatpush.msra.mxu0 0.0
        %1304 = vmatpush.msra.mxu0 0.0
        %1305 = vmatpush.msra.mxu0 %v1276
        %1306 = vmatpush.msra.mxu0 %v1274
        %1307 = vmatpush.msra.mxu0 %v1272
        %1308 = vmatpush.msra.mxu0 %v1270
        %1309 = vmatmul.f32.gmra.mxu0 %v1282
        %v1310 = vpop.f32.mrf.mxu0
        %v1311 = vadd.f32 0.0, %v1310
        %1312 = vmatmul.f32.gmra.mxu0 %v1285
        %v1313 = vpop.f32.mrf.mxu0
        %v1314 = vadd.f32 0.0, %v1313
        %1315 = vmatmul.f32.gmra.mxu0 %v1288
        %v1316 = vpop.f32.mrf.mxu0
        %v1317 = vadd.f32 0.0, %v1316
        %1318 = vmatmul.f32.gmra.mxu0 %v1291
        %v1319 = vpop.f32.mrf.mxu0
        %v1320 = vadd.f32 0.0, %v1319
        %1321 = vdwg.mxu0
        %v1322 = vld [vmem:[#allocation7 + $0x18] sm:$0xff]
        %v1324 = vsel %vm374, %v1311, 0
        %v1327 = vsel %vm374, %v1314, 0
        %v1330 = vsel %vm374, %v1317, 0
        %v1333 = vsel %vm374, %v1320, 0
        %1335 = vmatpush.msra.mxu0 0.0
        %1336 = vmatpush.msra.mxu0 0.0
        %1337 = vmatpush.msra.mxu0 0.0
        %1338 = vmatpush.msra.mxu0 0.0
        %1339 = vmatpush.msra.mxu0 0.0
        %1340 = vmatpush.msra.mxu0 0.0
        %1341 = vmatpush.msra.mxu0 0.0
        %1342 = vmatpush.msra.mxu0 0.0
        %1343 = vmatpush.msra.mxu0 0.0
        %1344 = vmatpush.msra.mxu0 0.0
        %1345 = vmatpush.msra.mxu0 0.0
        %1346 = vmatpush.msra.mxu0 0.0
        %1347 = vmatpush.msra.mxu0 0.0
        %1348 = vmatpush.msra.mxu0 0.0
        %1349 = vmatpush.msra.mxu0 0.0
        %1350 = vmatpush.msra.mxu0 %v1322
        %1351 = vmatmul.f32.gmra.mxu0 %v1324
        %v1352 = vpop.f32.mrf.mxu0
        %v1353 = vadd.f32 0.0, %v1352
        %1354 = vmatmul.f32.gmra.mxu0 %v1327
        %v1355 = vpop.f32.mrf.mxu0
        %v1356 = vadd.f32 0.0, %v1355
        %1357 = vmatmul.f32.gmra.mxu0 %v1330
        %v1358 = vpop.f32.mrf.mxu0
        %v1359 = vadd.f32 0.0, %v1358
        %1360 = vmatmul.f32.gmra.mxu0 %v1333
        %v1361 = vpop.f32.mrf.mxu0
        %v1362 = vadd.f32 0.0, %v1361
        %1363 = vdwg.mxu0
        %v1364 = vadd.f32 %v1108, %v1353
        %v1365 = vadd.f32 %v1109, %v1356
        %v1366 = vadd.f32 %v1110, %v1359
        %v1367 = vadd.f32 %v1111, %v1362
        %1368 = vrot.lane.b32.xlu0 %v302, 96
        %v1369 = vpop.permute.xlu0 %1368
        %1370 = vrot.lane.b32.xlu0 %v305, 96
        %v1371 = vpop.permute.xlu0 %1370
        %1372 = vrot.lane.b32.xlu0 %v308, 96
        %v1373 = vpop.permute.xlu0 %1372
        %1374 = vrot.lane.b32.xlu0 %v311, 96
        %v1375 = vpop.permute.xlu0 %1374
        %1376 = vrot.lane.b32.xlu0 %v302, 32
        %v1377 = vpop.permute.xlu0 %1376
        %1378 = vrot.lane.b32.xlu0 %v305, 32
        %v1379 = vpop.permute.xlu0 %1378
        %1380 = vrot.lane.b32.xlu0 %v308, 32
        %v1381 = vpop.permute.xlu0 %1380
        %1382 = vrot.lane.b32.xlu0 %v311, 32
        %v1383 = vpop.permute.xlu0 %1382
        %v1384 = vsel %vm374, %v1369, 0
        %v1386 = vsel %vm374, %v1371, 0
        %v1388 = vsel %vm374, %v1373, 0
        %v1390 = vsel %vm374, %v1375, 0
        %v1392 = vsel %vm374, %v1377, 0
        %v1394 = vsel %vm374, %v1379, 0
        %v1396 = vsel %vm374, %v1381, 0
        %v1398 = vsel %vm374, %v1383, 0
        %1400 = vmatpush.xpose.msra.mxu0 0.0
        %1401 = vmatpush.xpose.msra.mxu0 0.0
        %1402 = vmatpush.xpose.msra.mxu0 0.0
        %1403 = vmatpush.xpose.msra.mxu0 0.0
        %1404 = vmatpush.xpose.msra.mxu0 0.0
        %1405 = vmatpush.xpose.msra.mxu0 0.0
        %1406 = vmatpush.xpose.msra.mxu0 0.0
        %1407 = vmatpush.xpose.msra.mxu0 0.0
        %1408 = vmatpush.xpose.msra.mxu0 0.0
        %1409 = vmatpush.xpose.msra.mxu0 0.0
        %1410 = vmatpush.xpose.msra.mxu0 0.0
        %1411 = vmatpush.xpose.msra.mxu0 0.0
        %1412 = vmatpush.xpose.msra.mxu0 %v1398
        %1413 = vmatpush.xpose.msra.mxu0 %v1396
        %1414 = vmatpush.xpose.msra.mxu0 %v1394
        %1415 = vmatpush.xpose.msra.mxu0 %v1392
        %1416 = vmatmul.f32.gmra.mxu0 %v1384
        %v1417 = vpop.f32.mrf.mxu0
        %v1418 = vadd.f32 %v358, %v1417
        %1419 = vmatmul.f32.gmra.mxu0 %v1386
        %v1420 = vpop.f32.mrf.mxu0
        %v1421 = vadd.f32 %v359, %v1420
        %1422 = vmatmul.f32.gmra.mxu0 %v1388
        %v1423 = vpop.f32.mrf.mxu0
        %v1424 = vadd.f32 %v360, %v1423
        %1425 = vmatmul.f32.gmra.mxu0 %v1390
        %v1426 = vpop.f32.mrf.mxu0
        %v1427 = vadd.f32 %v361, %v1426
        %1428 = vdwg.mxu0
        %v1429 = vsel %vm420, %v1418, -inf
        %1430 = vmax.xlane.f32.xlu0 %v1429
        %v1431 = vpop.xlane.xlu0 %1430
        %v1432 = vsel %vm420, %v1421, -inf
        %1433 = vmax.xlane.f32.xlu0 %v1432
        %v1434 = vpop.xlane.xlu0 %1433
        %v1435 = vsel %vm420, %v1424, -inf
        %1436 = vmax.xlane.f32.xlu0 %v1435
        %v1437 = vpop.xlane.xlu0 %1436
        %v1438 = vsel %vm420, %v1427, -inf
        %1439 = vmax.xlane.f32.xlu0 %v1438
        %v1440 = vpop.xlane.xlu0 %1439
        %v1441 = vsub.f32 %v1418, %v1431
        %v1442 = vsub.f32 %v1421, %v1434
        %v1443 = vsub.f32 %v1424, %v1437
        %v1444 = vsub.f32 %v1427, %v1440
        %v1445 = vmul.f32 %v1441, 1.442695
        %v1446 = vpow.pop %v1445
        %v1447 = vmul.f32 %v1442, 1.442695
        %v1448 = vpow.pop %v1447
        %v1449 = vmul.f32 %v1443, 1.442695
        %v1450 = vpow.pop %v1449
        %v1451 = vmul.f32 %v1444, 1.442695
        %v1452 = vpow.pop %v1451
        %v1453 = vsel %vm420, %v1446, 0.0
        %1454 = vadd.xlane.f32.xlu0 %v1453
        %v1455 = vpop.xlane.xlu0 %1454
        %v1456 = vsel %vm420, %v1448, 0.0
        %1457 = vadd.xlane.f32.xlu0 %v1456
        %v1458 = vpop.xlane.xlu0 %1457
        %v1459 = vsel %vm420, %v1450, 0.0
        %1460 = vadd.xlane.f32.xlu0 %v1459
        %v1461 = vpop.xlane.xlu0 %1460
        %v1462 = vsel %vm420, %v1452, 0.0
        %1463 = vadd.xlane.f32.xlu0 %v1462
        %v1464 = vpop.xlane.xlu0 %1463
        %v1465 = vrcp.pop %v1455
        %v1466 = vmul.f32 %v1455, %v1465
        %v1467 = vsub.f32 1.0, %v1466
        %v1468 = vmul.f32 %v1465, %v1467
        %v1469 = vadd.f32 %v1465, %v1468
        %vm1470 = vweird.f32 %v1455
        %vm1471 = vweird.f32 %v1465
        %vm1472 = vmor %vm1470, %vm1471
        %v1473 = vsel %vm1472, %v1465, %v1469
        %v1474 = vand.u32 2147483647, %v1455
        %vm1475 = vcmp.eq.f32.partialorder %v1474, 8.507059e+37
        %v1476 = vand.u32 %v1455, 2147483648
        %v1477 = vor.u32 1.1754944e-38, %v1476
        %v1478 = vsel %vm1475, %v1477, %v1473
        %v1479 = vrcp.pop %v1458
        %v1480 = vmul.f32 %v1458, %v1479
        %v1481 = vsub.f32 1.0, %v1480
        %v1482 = vmul.f32 %v1479, %v1481
        %v1483 = vadd.f32 %v1479, %v1482
        %vm1484 = vweird.f32 %v1458
        %vm1485 = vweird.f32 %v1479
        %vm1486 = vmor %vm1484, %vm1485
        %v1487 = vsel %vm1486, %v1479, %v1483
        %v1488 = vand.u32 2147483647, %v1458
        %vm1489 = vcmp.eq.f32.partialorder %v1488, 8.507059e+37
        %v1490 = vand.u32 %v1458, 2147483648
        %v1491 = vor.u32 1.1754944e-38, %v1490
        %v1492 = vsel %vm1489, %v1491, %v1487
        %v1493 = vrcp.pop %v1461
        %v1494 = vmul.f32 %v1461, %v1493
        %v1495 = vsub.f32 1.0, %v1494
        %v1496 = vmul.f32 %v1493, %v1495
        %v1497 = vadd.f32 %v1493, %v1496
        %vm1498 = vweird.f32 %v1461
        %vm1499 = vweird.f32 %v1493
        %vm1500 = vmor %vm1498, %vm1499
        %v1501 = vsel %vm1500, %v1493, %v1497
        %v1502 = vand.u32 2147483647, %v1461
        %vm1503 = vcmp.eq.f32.partialorder %v1502, 8.507059e+37
        %v1504 = vand.u32 %v1461, 2147483648
        %v1505 = vor.u32 1.1754944e-38, %v1504
        %v1506 = vsel %vm1503, %v1505, %v1501
        %v1507 = vrcp.pop %v1464
        %v1508 = vmul.f32 %v1464, %v1507
        %v1509 = vsub.f32 1.0, %v1508
        %v1510 = vmul.f32 %v1507, %v1509
        %v1511 = vadd.f32 %v1507, %v1510
        %vm1512 = vweird.f32 %v1464
        %vm1513 = vweird.f32 %v1507
        %vm1514 = vmor %vm1512, %vm1513
        %v1515 = vsel %vm1514, %v1507, %v1511
        %v1516 = vand.u32 2147483647, %v1464
        %vm1517 = vcmp.eq.f32.partialorder %v1516, 8.507059e+37
        %v1518 = vand.u32 %v1464, 2147483648
        %v1519 = vor.u32 1.1754944e-38, %v1518
        %v1520 = vsel %vm1517, %v1519, %v1515
        %v1521 = vmul.f32 %v1446, %v1478
        %v1522 = vmul.f32 %v1448, %v1492
        %v1523 = vmul.f32 %v1450, %v1506
        %v1524 = vmul.f32 %v1452, %v1520
        %1525 = vrot.lane.b32.xlu0 %v331, 96
        %v1526 = vpop.permute.xlu0 %1525
        %1527 = vrot.lane.b32.xlu0 %v334, 96
        %v1528 = vpop.permute.xlu0 %1527
        %1529 = vrot.lane.b32.xlu0 %v337, 96
        %v1530 = vpop.permute.xlu0 %1529
        %1531 = vrot.lane.b32.xlu0 %v340, 96
        %v1532 = vpop.permute.xlu0 %1531
        %v1538 = vsel %vm420, %v1521, 0
        %v1541 = vsel %vm420, %v1522, 0
        %v1544 = vsel %vm420, %v1523, 0
        %v1547 = vsel %vm420, %v1524, 0
        %1549 = vmatpush.msra.mxu0 0.0
        %1550 = vmatpush.msra.mxu0 0.0
        %1551 = vmatpush.msra.mxu0 0.0
        %1552 = vmatpush.msra.mxu0 0.0
        %1553 = vmatpush.msra.mxu0 0.0
        %1554 = vmatpush.msra.mxu0 0.0
        %1555 = vmatpush.msra.mxu0 0.0
        %1556 = vmatpush.msra.mxu0 0.0
        %1557 = vmatpush.msra.mxu0 0.0
        %1558 = vmatpush.msra.mxu0 0.0
        %1559 = vmatpush.msra.mxu0 0.0
        %1560 = vmatpush.msra.mxu0 0.0
        %1561 = vmatpush.msra.mxu0 %v1532
        %1562 = vmatpush.msra.mxu0 %v1530
        %1563 = vmatpush.msra.mxu0 %v1528
        %1564 = vmatpush.msra.mxu0 %v1526
        %1565 = vmatmul.f32.gmra.mxu0 %v1538
        %v1566 = vpop.f32.mrf.mxu0
        %v1567 = vadd.f32 0.0, %v1566
        %1568 = vmatmul.f32.gmra.mxu0 %v1541
        %v1569 = vpop.f32.mrf.mxu0
        %v1570 = vadd.f32 0.0, %v1569
        %1571 = vmatmul.f32.gmra.mxu0 %v1544
        %v1572 = vpop.f32.mrf.mxu0
        %v1573 = vadd.f32 0.0, %v1572
        %1574 = vmatmul.f32.gmra.mxu0 %v1547
        %v1575 = vpop.f32.mrf.mxu0
        %v1576 = vadd.f32 0.0, %v1575
        %1577 = vdwg.mxu0
        %v1578 = vld [vmem:[#allocation7 + $0x20] sm:$0xff]
        %v1580 = vsel %vm374, %v1567, 0
        %v1583 = vsel %vm374, %v1570, 0
        %v1586 = vsel %vm374, %v1573, 0
        %v1589 = vsel %vm374, %v1576, 0
        %1591 = vmatpush.msra.mxu0 0.0
        %1592 = vmatpush.msra.mxu0 0.0
        %1593 = vmatpush.msra.mxu0 0.0
        %1594 = vmatpush.msra.mxu0 0.0
        %1595 = vmatpush.msra.mxu0 0.0
        %1596 = vmatpush.msra.mxu0 0.0
        %1597 = vmatpush.msra.mxu0 0.0
        %1598 = vmatpush.msra.mxu0 0.0
        %1599 = vmatpush.msra.mxu0 0.0
        %1600 = vmatpush.msra.mxu0 0.0
        %1601 = vmatpush.msra.mxu0 0.0
        %1602 = vmatpush.msra.mxu0 0.0
        %1603 = vmatpush.msra.mxu0 0.0
        %1604 = vmatpush.msra.mxu0 0.0
        %1605 = vmatpush.msra.mxu0 0.0
        %1606 = vmatpush.msra.mxu0 %v1578
        %1607 = vmatmul.f32.gmra.mxu0 %v1580
        %v1608 = vpop.f32.mrf.mxu0
        %v1609 = vadd.f32 0.0, %v1608
        %1610 = vmatmul.f32.gmra.mxu0 %v1583
        %v1611 = vpop.f32.mrf.mxu0
        %v1612 = vadd.f32 0.0, %v1611
        %1613 = vmatmul.f32.gmra.mxu0 %v1586
        %v1614 = vpop.f32.mrf.mxu0
        %v1615 = vadd.f32 0.0, %v1614
        %1616 = vmatmul.f32.gmra.mxu0 %v1589
        %v1617 = vpop.f32.mrf.mxu0
        %v1618 = vadd.f32 0.0, %v1617
        %1619 = vdwg.mxu0
        %v1620 = vadd.f32 %v1364, %v1609
        %v1621 = vadd.f32 %v1365, %v1612
        %v1622 = vadd.f32 %v1366, %v1615
        %v1623 = vadd.f32 %v1367, %v1618
        %1624 = vrot.lane.b32.xlu0 %v302, 88
        %v1625 = vpop.permute.xlu0 %1624
        %1626 = vrot.lane.b32.xlu0 %v305, 88
        %v1627 = vpop.permute.xlu0 %1626
        %1628 = vrot.lane.b32.xlu0 %v308, 88
        %v1629 = vpop.permute.xlu0 %1628
        %1630 = vrot.lane.b32.xlu0 %v311, 88
        %v1631 = vpop.permute.xlu0 %1630
        %1632 = vrot.lane.b32.xlu0 %v302, 24
        %v1633 = vpop.permute.xlu0 %1632
        %1634 = vrot.lane.b32.xlu0 %v305, 24
        %v1635 = vpop.permute.xlu0 %1634
        %1636 = vrot.lane.b32.xlu0 %v308, 24
        %v1637 = vpop.permute.xlu0 %1636
        %1638 = vrot.lane.b32.xlu0 %v311, 24
        %v1639 = vpop.permute.xlu0 %1638
        %v1640 = vsel %vm374, %v1625, 0
        %v1642 = vsel %vm374, %v1627, 0
        %v1644 = vsel %vm374, %v1629, 0
        %v1646 = vsel %vm374, %v1631, 0
        %v1648 = vsel %vm374, %v1633, 0
        %v1650 = vsel %vm374, %v1635, 0
        %v1652 = vsel %vm374, %v1637, 0
        %v1654 = vsel %vm374, %v1639, 0
        %1656 = vmatpush.xpose.msra.mxu0 0.0
        %1657 = vmatpush.xpose.msra.mxu0 0.0
        %1658 = vmatpush.xpose.msra.mxu0 0.0
        %1659 = vmatpush.xpose.msra.mxu0 0.0
        %1660 = vmatpush.xpose.msra.mxu0 0.0
        %1661 = vmatpush.xpose.msra.mxu0 0.0
        %1662 = vmatpush.xpose.msra.mxu0 0.0
        %1663 = vmatpush.xpose.msra.mxu0 0.0
        %1664 = vmatpush.xpose.msra.mxu0 0.0
        %1665 = vmatpush.xpose.msra.mxu0 0.0
        %1666 = vmatpush.xpose.msra.mxu0 0.0
        %1667 = vmatpush.xpose.msra.mxu0 0.0
        %1668 = vmatpush.xpose.msra.mxu0 %v1654
        %1669 = vmatpush.xpose.msra.mxu0 %v1652
        %1670 = vmatpush.xpose.msra.mxu0 %v1650
        %1671 = vmatpush.xpose.msra.mxu0 %v1648
        %1672 = vmatmul.f32.gmra.mxu0 %v1640
        %v1673 = vpop.f32.mrf.mxu0
        %v1674 = vadd.f32 %v358, %v1673
        %1675 = vmatmul.f32.gmra.mxu0 %v1642
        %v1676 = vpop.f32.mrf.mxu0
        %v1677 = vadd.f32 %v359, %v1676
        %1678 = vmatmul.f32.gmra.mxu0 %v1644
        %v1679 = vpop.f32.mrf.mxu0
        %v1680 = vadd.f32 %v360, %v1679
        %1681 = vmatmul.f32.gmra.mxu0 %v1646
        %v1682 = vpop.f32.mrf.mxu0
        %v1683 = vadd.f32 %v361, %v1682
        %1684 = vdwg.mxu0
        %v1685 = vsel %vm420, %v1674, -inf
        %1686 = vmax.xlane.f32.xlu0 %v1685
        %v1687 = vpop.xlane.xlu0 %1686
        %v1688 = vsel %vm420, %v1677, -inf
        %1689 = vmax.xlane.f32.xlu0 %v1688
        %v1690 = vpop.xlane.xlu0 %1689
        %v1691 = vsel %vm420, %v1680, -inf
        %1692 = vmax.xlane.f32.xlu0 %v1691
        %v1693 = vpop.xlane.xlu0 %1692
        %v1694 = vsel %vm420, %v1683, -inf
        %1695 = vmax.xlane.f32.xlu0 %v1694
        %v1696 = vpop.xlane.xlu0 %1695
        %v1697 = vsub.f32 %v1674, %v1687
        %v1698 = vsub.f32 %v1677, %v1690
        %v1699 = vsub.f32 %v1680, %v1693
        %v1700 = vsub.f32 %v1683, %v1696
        %v1701 = vmul.f32 %v1697, 1.442695
        %v1702 = vpow.pop %v1701
        %v1703 = vmul.f32 %v1698, 1.442695
        %v1704 = vpow.pop %v1703
        %v1705 = vmul.f32 %v1699, 1.442695
        %v1706 = vpow.pop %v1705
        %v1707 = vmul.f32 %v1700, 1.442695
        %v1708 = vpow.pop %v1707
        %v1709 = vsel %vm420, %v1702, 0.0
        %1710 = vadd.xlane.f32.xlu0 %v1709
        %v1711 = vpop.xlane.xlu0 %1710
        %v1712 = vsel %vm420, %v1704, 0.0
        %1713 = vadd.xlane.f32.xlu0 %v1712
        %v1714 = vpop.xlane.xlu0 %1713
        %v1715 = vsel %vm420, %v1706, 0.0
        %1716 = vadd.xlane.f32.xlu0 %v1715
        %v1717 = vpop.xlane.xlu0 %1716
        %v1718 = vsel %vm420, %v1708, 0.0
        %1719 = vadd.xlane.f32.xlu0 %v1718
        %v1720 = vpop.xlane.xlu0 %1719
        %v1721 = vrcp.pop %v1711
        %v1722 = vmul.f32 %v1711, %v1721
        %v1723 = vsub.f32 1.0, %v1722
        %v1724 = vmul.f32 %v1721, %v1723
        %v1725 = vadd.f32 %v1721, %v1724
        %vm1726 = vweird.f32 %v1711
        %vm1727 = vweird.f32 %v1721
        %vm1728 = vmor %vm1726, %vm1727
        %v1729 = vsel %vm1728, %v1721, %v1725
        %v1730 = vand.u32 2147483647, %v1711
        %vm1731 = vcmp.eq.f32.partialorder %v1730, 8.507059e+37
        %v1732 = vand.u32 %v1711, 2147483648
        %v1733 = vor.u32 1.1754944e-38, %v1732
        %v1734 = vsel %vm1731, %v1733, %v1729
        %v1735 = vrcp.pop %v1714
        %v1736 = vmul.f32 %v1714, %v1735
        %v1737 = vsub.f32 1.0, %v1736
        %v1738 = vmul.f32 %v1735, %v1737
        %v1739 = vadd.f32 %v1735, %v1738
        %vm1740 = vweird.f32 %v1714
        %vm1741 = vweird.f32 %v1735
        %vm1742 = vmor %vm1740, %vm1741
        %v1743 = vsel %vm1742, %v1735, %v1739
        %v1744 = vand.u32 2147483647, %v1714
        %vm1745 = vcmp.eq.f32.partialorder %v1744, 8.507059e+37
        %v1746 = vand.u32 %v1714, 2147483648
        %v1747 = vor.u32 1.1754944e-38, %v1746
        %v1748 = vsel %vm1745, %v1747, %v1743
        %v1749 = vrcp.pop %v1717
        %v1750 = vmul.f32 %v1717, %v1749
        %v1751 = vsub.f32 1.0, %v1750
        %v1752 = vmul.f32 %v1749, %v1751
        %v1753 = vadd.f32 %v1749, %v1752
        %vm1754 = vweird.f32 %v1717
        %vm1755 = vweird.f32 %v1749
        %vm1756 = vmor %vm1754, %vm1755
        %v1757 = vsel %vm1756, %v1749, %v1753
        %v1758 = vand.u32 2147483647, %v1717
        %vm1759 = vcmp.eq.f32.partialorder %v1758, 8.507059e+37
        %v1760 = vand.u32 %v1717, 2147483648
        %v1761 = vor.u32 1.1754944e-38, %v1760
        %v1762 = vsel %vm1759, %v1761, %v1757
        %v1763 = vrcp.pop %v1720
        %v1764 = vmul.f32 %v1720, %v1763
        %v1765 = vsub.f32 1.0, %v1764
        %v1766 = vmul.f32 %v1763, %v1765
        %v1767 = vadd.f32 %v1763, %v1766
        %vm1768 = vweird.f32 %v1720
        %vm1769 = vweird.f32 %v1763
        %vm1770 = vmor %vm1768, %vm1769
        %v1771 = vsel %vm1770, %v1763, %v1767
        %v1772 = vand.u32 2147483647, %v1720
        %vm1773 = vcmp.eq.f32.partialorder %v1772, 8.507059e+37
        %v1774 = vand.u32 %v1720, 2147483648
        %v1775 = vor.u32 1.1754944e-38, %v1774
        %v1776 = vsel %vm1773, %v1775, %v1771
        %v1777 = vmul.f32 %v1702, %v1734
        %v1778 = vmul.f32 %v1704, %v1748
        %v1779 = vmul.f32 %v1706, %v1762
        %v1780 = vmul.f32 %v1708, %v1776
        %1781 = vrot.lane.b32.xlu0 %v331, 88
        %v1782 = vpop.permute.xlu0 %1781
        %1783 = vrot.lane.b32.xlu0 %v334, 88
        %v1784 = vpop.permute.xlu0 %1783
        %1785 = vrot.lane.b32.xlu0 %v337, 88
        %v1786 = vpop.permute.xlu0 %1785
        %1787 = vrot.lane.b32.xlu0 %v340, 88
        %v1788 = vpop.permute.xlu0 %1787
        %v1794 = vsel %vm420, %v1777, 0
        %v1797 = vsel %vm420, %v1778, 0
        %v1800 = vsel %vm420, %v1779, 0
        %v1803 = vsel %vm420, %v1780, 0
        %1805 = vmatpush.msra.mxu0 0.0
        %1806 = vmatpush.msra.mxu0 0.0
        %1807 = vmatpush.msra.mxu0 0.0
        %1808 = vmatpush.msra.mxu0 0.0
        %1809 = vmatpush.msra.mxu0 0.0
        %1810 = vmatpush.msra.mxu0 0.0
        %1811 = vmatpush.msra.mxu0 0.0
        %1812 = vmatpush.msra.mxu0 0.0
        %1813 = vmatpush.msra.mxu0 0.0
        %1814 = vmatpush.msra.mxu0 0.0
        %1815 = vmatpush.msra.mxu0 0.0
        %1816 = vmatpush.msra.mxu0 0.0
        %1817 = vmatpush.msra.mxu0 %v1788
        %1818 = vmatpush.msra.mxu0 %v1786
        %1819 = vmatpush.msra.mxu0 %v1784
        %1820 = vmatpush.msra.mxu0 %v1782
        %1821 = vmatmul.f32.gmra.mxu0 %v1794
        %v1822 = vpop.f32.mrf.mxu0
        %v1823 = vadd.f32 0.0, %v1822
        %1824 = vmatmul.f32.gmra.mxu0 %v1797
        %v1825 = vpop.f32.mrf.mxu0
        %v1826 = vadd.f32 0.0, %v1825
        %1827 = vmatmul.f32.gmra.mxu0 %v1800
        %v1828 = vpop.f32.mrf.mxu0
        %v1829 = vadd.f32 0.0, %v1828
        %1830 = vmatmul.f32.gmra.mxu0 %v1803
        %v1831 = vpop.f32.mrf.mxu0
        %v1832 = vadd.f32 0.0, %v1831
        %1833 = vdwg.mxu0
        %v1834 = vld [vmem:[#allocation7 + $0x28] sm:$0xff]
        %v1836 = vsel %vm374, %v1823, 0
        %v1839 = vsel %vm374, %v1826, 0
        %v1842 = vsel %vm374, %v1829, 0
        %v1845 = vsel %vm374, %v1832, 0
        %1847 = vmatpush.msra.mxu0 0.0
        %1848 = vmatpush.msra.mxu0 0.0
        %1849 = vmatpush.msra.mxu0 0.0
        %1850 = vmatpush.msra.mxu0 0.0
        %1851 = vmatpush.msra.mxu0 0.0
        %1852 = vmatpush.msra.mxu0 0.0
        %1853 = vmatpush.msra.mxu0 0.0
        %1854 = vmatpush.msra.mxu0 0.0
        %1855 = vmatpush.msra.mxu0 0.0
        %1856 = vmatpush.msra.mxu0 0.0
        %1857 = vmatpush.msra.mxu0 0.0
        %1858 = vmatpush.msra.mxu0 0.0
        %1859 = vmatpush.msra.mxu0 0.0
        %1860 = vmatpush.msra.mxu0 0.0
        %1861 = vmatpush.msra.mxu0 0.0
        %1862 = vmatpush.msra.mxu0 %v1834
        %1863 = vmatmul.f32.gmra.mxu0 %v1836
        %v1864 = vpop.f32.mrf.mxu0
        %v1865 = vadd.f32 0.0, %v1864
        %1866 = vmatmul.f32.gmra.mxu0 %v1839
        %v1867 = vpop.f32.mrf.mxu0
        %v1868 = vadd.f32 0.0, %v1867
        %1869 = vmatmul.f32.gmra.mxu0 %v1842
        %v1870 = vpop.f32.mrf.mxu0
        %v1871 = vadd.f32 0.0, %v1870
        %1872 = vmatmul.f32.gmra.mxu0 %v1845
        %v1873 = vpop.f32.mrf.mxu0
        %v1874 = vadd.f32 0.0, %v1873
        %1875 = vdwg.mxu0
        %v1876 = vadd.f32 %v1620, %v1865
        %v1877 = vadd.f32 %v1621, %v1868
        %v1878 = vadd.f32 %v1622, %v1871
        %v1879 = vadd.f32 %v1623, %v1874
        %1880 = vrot.lane.b32.xlu0 %v302, 80
        %v1881 = vpop.permute.xlu0 %1880
        %1882 = vrot.lane.b32.xlu0 %v305, 80
        %v1883 = vpop.permute.xlu0 %1882
        %1884 = vrot.lane.b32.xlu0 %v308, 80
        %v1885 = vpop.permute.xlu0 %1884
        %1886 = vrot.lane.b32.xlu0 %v311, 80
        %v1887 = vpop.permute.xlu0 %1886
        %1888 = vrot.lane.b32.xlu0 %v302, 16
        %v1889 = vpop.permute.xlu0 %1888
        %1890 = vrot.lane.b32.xlu0 %v305, 16
        %v1891 = vpop.permute.xlu0 %1890
        %1892 = vrot.lane.b32.xlu0 %v308, 16
        %v1893 = vpop.permute.xlu0 %1892
        %1894 = vrot.lane.b32.xlu0 %v311, 16
        %v1895 = vpop.permute.xlu0 %1894
        %v1896 = vsel %vm374, %v1881, 0
        %v1898 = vsel %vm374, %v1883, 0
        %v1900 = vsel %vm374, %v1885, 0
        %v1902 = vsel %vm374, %v1887, 0
        %v1904 = vsel %vm374, %v1889, 0
        %v1906 = vsel %vm374, %v1891, 0
        %v1908 = vsel %vm374, %v1893, 0
        %v1910 = vsel %vm374, %v1895, 0
        %1912 = vmatpush.xpose.msra.mxu0 0.0
        %1913 = vmatpush.xpose.msra.mxu0 0.0
        %1914 = vmatpush.xpose.msra.mxu0 0.0
        %1915 = vmatpush.xpose.msra.mxu0 0.0
        %1916 = vmatpush.xpose.msra.mxu0 0.0
        %1917 = vmatpush.xpose.msra.mxu0 0.0
        %1918 = vmatpush.xpose.msra.mxu0 0.0
        %1919 = vmatpush.xpose.msra.mxu0 0.0
        %1920 = vmatpush.xpose.msra.mxu0 0.0
        %1921 = vmatpush.xpose.msra.mxu0 0.0
        %1922 = vmatpush.xpose.msra.mxu0 0.0
        %1923 = vmatpush.xpose.msra.mxu0 0.0
        %1924 = vmatpush.xpose.msra.mxu0 %v1910
        %1925 = vmatpush.xpose.msra.mxu0 %v1908
        %1926 = vmatpush.xpose.msra.mxu0 %v1906
        %1927 = vmatpush.xpose.msra.mxu0 %v1904
        %1928 = vmatmul.f32.gmra.mxu0 %v1896
        %v1929 = vpop.f32.mrf.mxu0
        %v1930 = vadd.f32 %v358, %v1929
        %1931 = vmatmul.f32.gmra.mxu0 %v1898
        %v1932 = vpop.f32.mrf.mxu0
        %v1933 = vadd.f32 %v359, %v1932
        %1934 = vmatmul.f32.gmra.mxu0 %v1900
        %v1935 = vpop.f32.mrf.mxu0
        %v1936 = vadd.f32 %v360, %v1935
        %1937 = vmatmul.f32.gmra.mxu0 %v1902
        %v1938 = vpop.f32.mrf.mxu0
        %v1939 = vadd.f32 %v361, %v1938
        %1940 = vdwg.mxu0
        %v1941 = vsel %vm420, %v1930, -inf
        %1942 = vmax.xlane.f32.xlu0 %v1941
        %v1943 = vpop.xlane.xlu0 %1942
        %v1944 = vsel %vm420, %v1933, -inf
        %1945 = vmax.xlane.f32.xlu0 %v1944
        %v1946 = vpop.xlane.xlu0 %1945
        %v1947 = vsel %vm420, %v1936, -inf
        %1948 = vmax.xlane.f32.xlu0 %v1947
        %v1949 = vpop.xlane.xlu0 %1948
        %v1950 = vsel %vm420, %v1939, -inf
        %1951 = vmax.xlane.f32.xlu0 %v1950
        %v1952 = vpop.xlane.xlu0 %1951
        %v1953 = vsub.f32 %v1930, %v1943
        %v1954 = vsub.f32 %v1933, %v1946
        %v1955 = vsub.f32 %v1936, %v1949
        %v1956 = vsub.f32 %v1939, %v1952
        %v1957 = vmul.f32 %v1953, 1.442695
        %v1958 = vpow.pop %v1957
        %v1959 = vmul.f32 %v1954, 1.442695
        %v1960 = vpow.pop %v1959
        %v1961 = vmul.f32 %v1955, 1.442695
        %v1962 = vpow.pop %v1961
        %v1963 = vmul.f32 %v1956, 1.442695
        %v1964 = vpow.pop %v1963
        %v1965 = vsel %vm420, %v1958, 0.0
        %1966 = vadd.xlane.f32.xlu0 %v1965
        %v1967 = vpop.xlane.xlu0 %1966
        %v1968 = vsel %vm420, %v1960, 0.0
        %1969 = vadd.xlane.f32.xlu0 %v1968
        %v1970 = vpop.xlane.xlu0 %1969
        %v1971 = vsel %vm420, %v1962, 0.0
        %1972 = vadd.xlane.f32.xlu0 %v1971
        %v1973 = vpop.xlane.xlu0 %1972
        %v1974 = vsel %vm420, %v1964, 0.0
        %1975 = vadd.xlane.f32.xlu0 %v1974
        %v1976 = vpop.xlane.xlu0 %1975
        %v1977 = vrcp.pop %v1967
        %v1978 = vmul.f32 %v1967, %v1977
        %v1979 = vsub.f32 1.0, %v1978
        %v1980 = vmul.f32 %v1977, %v1979
        %v1981 = vadd.f32 %v1977, %v1980
        %vm1982 = vweird.f32 %v1967
        %vm1983 = vweird.f32 %v1977
        %vm1984 = vmor %vm1982, %vm1983
        %v1985 = vsel %vm1984, %v1977, %v1981
        %v1986 = vand.u32 2147483647, %v1967
        %vm1987 = vcmp.eq.f32.partialorder %v1986, 8.507059e+37
        %v1988 = vand.u32 %v1967, 2147483648
        %v1989 = vor.u32 1.1754944e-38, %v1988
        %v1990 = vsel %vm1987, %v1989, %v1985
        %v1991 = vrcp.pop %v1970
        %v1992 = vmul.f32 %v1970, %v1991
        %v1993 = vsub.f32 1.0, %v1992
        %v1994 = vmul.f32 %v1991, %v1993
        %v1995 = vadd.f32 %v1991, %v1994
        %vm1996 = vweird.f32 %v1970
        %vm1997 = vweird.f32 %v1991
        %vm1998 = vmor %vm1996, %vm1997
        %v1999 = vsel %vm1998, %v1991, %v1995
        %v2000 = vand.u32 2147483647, %v1970
        %vm2001 = vcmp.eq.f32.partialorder %v2000, 8.507059e+37
        %v2002 = vand.u32 %v1970, 2147483648
        %v2003 = vor.u32 1.1754944e-38, %v2002
        %v2004 = vsel %vm2001, %v2003, %v1999
        %v2005 = vrcp.pop %v1973
        %v2006 = vmul.f32 %v1973, %v2005
        %v2007 = vsub.f32 1.0, %v2006
        %v2008 = vmul.f32 %v2005, %v2007
        %v2009 = vadd.f32 %v2005, %v2008
        %vm2010 = vweird.f32 %v1973
        %vm2011 = vweird.f32 %v2005
        %vm2012 = vmor %vm2010, %vm2011
        %v2013 = vsel %vm2012, %v2005, %v2009
        %v2014 = vand.u32 2147483647, %v1973
        %vm2015 = vcmp.eq.f32.partialorder %v2014, 8.507059e+37
        %v2016 = vand.u32 %v1973, 2147483648
        %v2017 = vor.u32 1.1754944e-38, %v2016
        %v2018 = vsel %vm2015, %v2017, %v2013
        %v2019 = vrcp.pop %v1976
        %v2020 = vmul.f32 %v1976, %v2019
        %v2021 = vsub.f32 1.0, %v2020
        %v2022 = vmul.f32 %v2019, %v2021
        %v2023 = vadd.f32 %v2019, %v2022
        %vm2024 = vweird.f32 %v1976
        %vm2025 = vweird.f32 %v2019
        %vm2026 = vmor %vm2024, %vm2025
        %v2027 = vsel %vm2026, %v2019, %v2023
        %v2028 = vand.u32 2147483647, %v1976
        %vm2029 = vcmp.eq.f32.partialorder %v2028, 8.507059e+37
        %v2030 = vand.u32 %v1976, 2147483648
        %v2031 = vor.u32 1.1754944e-38, %v2030
        %v2032 = vsel %vm2029, %v2031, %v2027
        %v2033 = vmul.f32 %v1958, %v1990
        %v2034 = vmul.f32 %v1960, %v2004
        %v2035 = vmul.f32 %v1962, %v2018
        %v2036 = vmul.f32 %v1964, %v2032
        %2037 = vrot.lane.b32.xlu0 %v331, 80
        %v2038 = vpop.permute.xlu0 %2037
        %2039 = vrot.lane.b32.xlu0 %v334, 80
        %v2040 = vpop.permute.xlu0 %2039
        %2041 = vrot.lane.b32.xlu0 %v337, 80
        %v2042 = vpop.permute.xlu0 %2041
        %2043 = vrot.lane.b32.xlu0 %v340, 80
        %v2044 = vpop.permute.xlu0 %2043
        %v2050 = vsel %vm420, %v2033, 0
        %v2053 = vsel %vm420, %v2034, 0
        %v2056 = vsel %vm420, %v2035, 0
        %v2059 = vsel %vm420, %v2036, 0
        %2061 = vmatpush.msra.mxu0 0.0
        %2062 = vmatpush.msra.mxu0 0.0
        %2063 = vmatpush.msra.mxu0 0.0
        %2064 = vmatpush.msra.mxu0 0.0
        %2065 = vmatpush.msra.mxu0 0.0
        %2066 = vmatpush.msra.mxu0 0.0
        %2067 = vmatpush.msra.mxu0 0.0
        %2068 = vmatpush.msra.mxu0 0.0
        %2069 = vmatpush.msra.mxu0 0.0
        %2070 = vmatpush.msra.mxu0 0.0
        %2071 = vmatpush.msra.mxu0 0.0
        %2072 = vmatpush.msra.mxu0 0.0
        %2073 = vmatpush.msra.mxu0 %v2044
        %2074 = vmatpush.msra.mxu0 %v2042
        %2075 = vmatpush.msra.mxu0 %v2040
        %2076 = vmatpush.msra.mxu0 %v2038
        %2077 = vmatmul.f32.gmra.mxu0 %v2050
        %v2078 = vpop.f32.mrf.mxu0
        %v2079 = vadd.f32 0.0, %v2078
        %2080 = vmatmul.f32.gmra.mxu0 %v2053
        %v2081 = vpop.f32.mrf.mxu0
        %v2082 = vadd.f32 0.0, %v2081
        %2083 = vmatmul.f32.gmra.mxu0 %v2056
        %v2084 = vpop.f32.mrf.mxu0
        %v2085 = vadd.f32 0.0, %v2084
        %2086 = vmatmul.f32.gmra.mxu0 %v2059
        %v2087 = vpop.f32.mrf.mxu0
        %v2088 = vadd.f32 0.0, %v2087
        %2089 = vdwg.mxu0
        %v2090 = vld [vmem:[#allocation7 + $0x30] sm:$0xff]
        %v2092 = vsel %vm374, %v2079, 0
        %v2095 = vsel %vm374, %v2082, 0
        %v2098 = vsel %vm374, %v2085, 0
        %v2101 = vsel %vm374, %v2088, 0
        %2103 = vmatpush.msra.mxu0 0.0
        %2104 = vmatpush.msra.mxu0 0.0
        %2105 = vmatpush.msra.mxu0 0.0
        %2106 = vmatpush.msra.mxu0 0.0
        %2107 = vmatpush.msra.mxu0 0.0
        %2108 = vmatpush.msra.mxu0 0.0
        %2109 = vmatpush.msra.mxu0 0.0
        %2110 = vmatpush.msra.mxu0 0.0
        %2111 = vmatpush.msra.mxu0 0.0
        %2112 = vmatpush.msra.mxu0 0.0
        %2113 = vmatpush.msra.mxu0 0.0
        %2114 = vmatpush.msra.mxu0 0.0
        %2115 = vmatpush.msra.mxu0 0.0
        %2116 = vmatpush.msra.mxu0 0.0
        %2117 = vmatpush.msra.mxu0 0.0
        %2118 = vmatpush.msra.mxu0 %v2090
        %2119 = vmatmul.f32.gmra.mxu0 %v2092
        %v2120 = vpop.f32.mrf.mxu0
        %v2121 = vadd.f32 0.0, %v2120
        %2122 = vmatmul.f32.gmra.mxu0 %v2095
        %v2123 = vpop.f32.mrf.mxu0
        %v2124 = vadd.f32 0.0, %v2123
        %2125 = vmatmul.f32.gmra.mxu0 %v2098
        %v2126 = vpop.f32.mrf.mxu0
        %v2127 = vadd.f32 0.0, %v2126
        %2128 = vmatmul.f32.gmra.mxu0 %v2101
        %v2129 = vpop.f32.mrf.mxu0
        %v2130 = vadd.f32 0.0, %v2129
        %2131 = vdwg.mxu0
        %v2132 = vadd.f32 %v1876, %v2121
        %v2133 = vadd.f32 %v1877, %v2124
        %v2134 = vadd.f32 %v1878, %v2127
        %v2135 = vadd.f32 %v1879, %v2130
        %2136 = vrot.lane.b32.xlu0 %v302, 72
        %v2137 = vpop.permute.xlu0 %2136
        %2138 = vrot.lane.b32.xlu0 %v305, 72
        %v2139 = vpop.permute.xlu0 %2138
        %2140 = vrot.lane.b32.xlu0 %v308, 72
        %v2141 = vpop.permute.xlu0 %2140
        %2142 = vrot.lane.b32.xlu0 %v311, 72
        %v2143 = vpop.permute.xlu0 %2142
        %2144 = vrot.lane.b32.xlu0 %v302, 8
        %v2145 = vpop.permute.xlu0 %2144
        %2146 = vrot.lane.b32.xlu0 %v305, 8
        %v2147 = vpop.permute.xlu0 %2146
        %2148 = vrot.lane.b32.xlu0 %v308, 8
        %v2149 = vpop.permute.xlu0 %2148
        %2150 = vrot.lane.b32.xlu0 %v311, 8
        %v2151 = vpop.permute.xlu0 %2150
        %v2152 = vsel %vm374, %v2137, 0
        %v2154 = vsel %vm374, %v2139, 0
        %v2156 = vsel %vm374, %v2141, 0
        %v2158 = vsel %vm374, %v2143, 0
        %v2160 = vsel %vm374, %v2145, 0
        %v2162 = vsel %vm374, %v2147, 0
        %v2164 = vsel %vm374, %v2149, 0
        %v2166 = vsel %vm374, %v2151, 0
        %2168 = vmatpush.xpose.msra.mxu0 0.0
        %2169 = vmatpush.xpose.msra.mxu0 0.0
        %2170 = vmatpush.xpose.msra.mxu0 0.0
        %2171 = vmatpush.xpose.msra.mxu0 0.0
        %2172 = vmatpush.xpose.msra.mxu0 0.0
        %2173 = vmatpush.xpose.msra.mxu0 0.0
        %2174 = vmatpush.xpose.msra.mxu0 0.0
        %2175 = vmatpush.xpose.msra.mxu0 0.0
        %2176 = vmatpush.xpose.msra.mxu0 0.0
        %2177 = vmatpush.xpose.msra.mxu0 0.0
        %2178 = vmatpush.xpose.msra.mxu0 0.0
        %2179 = vmatpush.xpose.msra.mxu0 0.0
        %2180 = vmatpush.xpose.msra.mxu0 %v2166
        %2181 = vmatpush.xpose.msra.mxu0 %v2164
        %2182 = vmatpush.xpose.msra.mxu0 %v2162
        %2183 = vmatpush.xpose.msra.mxu0 %v2160
        %2184 = vmatmul.f32.gmra.mxu0 %v2152
        %v2185 = vpop.f32.mrf.mxu0
        %v2186 = vadd.f32 %v358, %v2185
        %2187 = vmatmul.f32.gmra.mxu0 %v2154
        %v2188 = vpop.f32.mrf.mxu0
        %v2189 = vadd.f32 %v359, %v2188
        %2190 = vmatmul.f32.gmra.mxu0 %v2156
        %v2191 = vpop.f32.mrf.mxu0
        %v2192 = vadd.f32 %v360, %v2191
        %2193 = vmatmul.f32.gmra.mxu0 %v2158
        %v2194 = vpop.f32.mrf.mxu0
        %v2195 = vadd.f32 %v361, %v2194
        %2196 = vdwg.mxu0
        %v2197 = vsel %vm420, %v2186, -inf
        %2198 = vmax.xlane.f32.xlu0 %v2197
        %v2199 = vpop.xlane.xlu0 %2198
        %v2200 = vsel %vm420, %v2189, -inf
        %2201 = vmax.xlane.f32.xlu0 %v2200
        %v2202 = vpop.xlane.xlu0 %2201
        %v2203 = vsel %vm420, %v2192, -inf
        %2204 = vmax.xlane.f32.xlu0 %v2203
        %v2205 = vpop.xlane.xlu0 %2204
        %v2206 = vsel %vm420, %v2195, -inf
        %2207 = vmax.xlane.f32.xlu0 %v2206
        %v2208 = vpop.xlane.xlu0 %2207
        %v2209 = vsub.f32 %v2186, %v2199
        %v2210 = vsub.f32 %v2189, %v2202
        %v2211 = vsub.f32 %v2192, %v2205
        %v2212 = vsub.f32 %v2195, %v2208
        %v2213 = vmul.f32 %v2209, 1.442695
        %v2214 = vpow.pop %v2213
        %v2215 = vmul.f32 %v2210, 1.442695
        %v2216 = vpow.pop %v2215
        %v2217 = vmul.f32 %v2211, 1.442695
        %v2218 = vpow.pop %v2217
        %v2219 = vmul.f32 %v2212, 1.442695
        %v2220 = vpow.pop %v2219
        %v2221 = vsel %vm420, %v2214, 0.0
        %2222 = vadd.xlane.f32.xlu0 %v2221
        %v2223 = vpop.xlane.xlu0 %2222
        %v2224 = vsel %vm420, %v2216, 0.0
        %2225 = vadd.xlane.f32.xlu0 %v2224
        %v2226 = vpop.xlane.xlu0 %2225
        %v2227 = vsel %vm420, %v2218, 0.0
        %2228 = vadd.xlane.f32.xlu0 %v2227
        %v2229 = vpop.xlane.xlu0 %2228
        %v2230 = vsel %vm420, %v2220, 0.0
        %2231 = vadd.xlane.f32.xlu0 %v2230
        %v2232 = vpop.xlane.xlu0 %2231
        %v2233 = vrcp.pop %v2223
        %v2234 = vmul.f32 %v2223, %v2233
        %v2235 = vsub.f32 1.0, %v2234
        %v2236 = vmul.f32 %v2233, %v2235
        %v2237 = vadd.f32 %v2233, %v2236
        %vm2238 = vweird.f32 %v2223
        %vm2239 = vweird.f32 %v2233
        %vm2240 = vmor %vm2238, %vm2239
        %v2241 = vsel %vm2240, %v2233, %v2237
        %v2242 = vand.u32 2147483647, %v2223
        %vm2243 = vcmp.eq.f32.partialorder %v2242, 8.507059e+37
        %v2244 = vand.u32 %v2223, 2147483648
        %v2245 = vor.u32 1.1754944e-38, %v2244
        %v2246 = vsel %vm2243, %v2245, %v2241
        %v2247 = vrcp.pop %v2226
        %v2248 = vmul.f32 %v2226, %v2247
        %v2249 = vsub.f32 1.0, %v2248
        %v2250 = vmul.f32 %v2247, %v2249
        %v2251 = vadd.f32 %v2247, %v2250
        %vm2252 = vweird.f32 %v2226
        %vm2253 = vweird.f32 %v2247
        %vm2254 = vmor %vm2252, %vm2253
        %v2255 = vsel %vm2254, %v2247, %v2251
        %v2256 = vand.u32 2147483647, %v2226
        %vm2257 = vcmp.eq.f32.partialorder %v2256, 8.507059e+37
        %v2258 = vand.u32 %v2226, 2147483648
        %v2259 = vor.u32 1.1754944e-38, %v2258
        %v2260 = vsel %vm2257, %v2259, %v2255
        %v2261 = vrcp.pop %v2229
        %v2262 = vmul.f32 %v2229, %v2261
        %v2263 = vsub.f32 1.0, %v2262
        %v2264 = vmul.f32 %v2261, %v2263
        %v2265 = vadd.f32 %v2261, %v2264
        %vm2266 = vweird.f32 %v2229
        %vm2267 = vweird.f32 %v2261
        %vm2268 = vmor %vm2266, %vm2267
        %v2269 = vsel %vm2268, %v2261, %v2265
        %v2270 = vand.u32 2147483647, %v2229
        %vm2271 = vcmp.eq.f32.partialorder %v2270, 8.507059e+37
        %v2272 = vand.u32 %v2229, 2147483648
        %v2273 = vor.u32 1.1754944e-38, %v2272
        %v2274 = vsel %vm2271, %v2273, %v2269
        %v2275 = vrcp.pop %v2232
        %v2276 = vmul.f32 %v2232, %v2275
        %v2277 = vsub.f32 1.0, %v2276
        %v2278 = vmul.f32 %v2275, %v2277
        %v2279 = vadd.f32 %v2275, %v2278
        %vm2280 = vweird.f32 %v2232
        %vm2281 = vweird.f32 %v2275
        %vm2282 = vmor %vm2280, %vm2281
        %v2283 = vsel %vm2282, %v2275, %v2279
        %v2284 = vand.u32 2147483647, %v2232
        %vm2285 = vcmp.eq.f32.partialorder %v2284, 8.507059e+37
        %v2286 = vand.u32 %v2232, 2147483648
        %v2287 = vor.u32 1.1754944e-38, %v2286
        %v2288 = vsel %vm2285, %v2287, %v2283
        %v2289 = vmul.f32 %v2214, %v2246
        %v2290 = vmul.f32 %v2216, %v2260
        %v2291 = vmul.f32 %v2218, %v2274
        %v2292 = vmul.f32 %v2220, %v2288
        %2293 = vrot.lane.b32.xlu0 %v331, 72
        %v2294 = vpop.permute.xlu0 %2293
        %2295 = vrot.lane.b32.xlu0 %v334, 72
        %v2296 = vpop.permute.xlu0 %2295
        %2297 = vrot.lane.b32.xlu0 %v337, 72
        %v2298 = vpop.permute.xlu0 %2297
        %2299 = vrot.lane.b32.xlu0 %v340, 72
        %v2300 = vpop.permute.xlu0 %2299
        %v2306 = vsel %vm420, %v2289, 0
        %v2309 = vsel %vm420, %v2290, 0
        %v2312 = vsel %vm420, %v2291, 0
        %v2315 = vsel %vm420, %v2292, 0
        %2317 = vmatpush.msra.mxu0 0.0
        %2318 = vmatpush.msra.mxu0 0.0
        %2319 = vmatpush.msra.mxu0 0.0
        %2320 = vmatpush.msra.mxu0 0.0
        %2321 = vmatpush.msra.mxu0 0.0
        %2322 = vmatpush.msra.mxu0 0.0
        %2323 = vmatpush.msra.mxu0 0.0
        %2324 = vmatpush.msra.mxu0 0.0
        %2325 = vmatpush.msra.mxu0 0.0
        %2326 = vmatpush.msra.mxu0 0.0
        %2327 = vmatpush.msra.mxu0 0.0
        %2328 = vmatpush.msra.mxu0 0.0
        %2329 = vmatpush.msra.mxu0 %v2300
        %2330 = vmatpush.msra.mxu0 %v2298
        %2331 = vmatpush.msra.mxu0 %v2296
        %2332 = vmatpush.msra.mxu0 %v2294
        %2333 = vmatmul.f32.gmra.mxu0 %v2306
        %v2334 = vpop.f32.mrf.mxu0
        %v2335 = vadd.f32 0.0, %v2334
        %2336 = vmatmul.f32.gmra.mxu0 %v2309
        %v2337 = vpop.f32.mrf.mxu0
        %v2338 = vadd.f32 0.0, %v2337
        %2339 = vmatmul.f32.gmra.mxu0 %v2312
        %v2340 = vpop.f32.mrf.mxu0
        %v2341 = vadd.f32 0.0, %v2340
        %2342 = vmatmul.f32.gmra.mxu0 %v2315
        %v2343 = vpop.f32.mrf.mxu0
        %v2344 = vadd.f32 0.0, %v2343
        %2345 = vdwg.mxu0
        %v2346 = vld [vmem:[#allocation7 + $0x38] sm:$0xff]
        %v2348 = vsel %vm374, %v2335, 0
        %v2351 = vsel %vm374, %v2338, 0
        %v2354 = vsel %vm374, %v2341, 0
        %v2357 = vsel %vm374, %v2344, 0
        %2359 = vmatpush.msra.mxu0 0.0
        %2360 = vmatpush.msra.mxu0 0.0
        %2361 = vmatpush.msra.mxu0 0.0
        %2362 = vmatpush.msra.mxu0 0.0
        %2363 = vmatpush.msra.mxu0 0.0
        %2364 = vmatpush.msra.mxu0 0.0
        %2365 = vmatpush.msra.mxu0 0.0
        %2366 = vmatpush.msra.mxu0 0.0
        %2367 = vmatpush.msra.mxu0 0.0
        %2368 = vmatpush.msra.mxu0 0.0
        %2369 = vmatpush.msra.mxu0 0.0
        %2370 = vmatpush.msra.mxu0 0.0
        %2371 = vmatpush.msra.mxu0 0.0
        %2372 = vmatpush.msra.mxu0 0.0
        %2373 = vmatpush.msra.mxu0 0.0
        %2374 = vmatpush.msra.mxu0 %v2346
        %2375 = vmatmul.f32.gmra.mxu0 %v2348
        %v2376 = vpop.f32.mrf.mxu0
        %v2377 = vadd.f32 0.0, %v2376
        %2378 = vmatmul.f32.gmra.mxu0 %v2351
        %v2379 = vpop.f32.mrf.mxu0
        %v2380 = vadd.f32 0.0, %v2379
        %2381 = vmatmul.f32.gmra.mxu0 %v2354
        %v2382 = vpop.f32.mrf.mxu0
        %v2383 = vadd.f32 0.0, %v2382
        %2384 = vmatmul.f32.gmra.mxu0 %v2357
        %v2385 = vpop.f32.mrf.mxu0
        %v2386 = vadd.f32 0.0, %v2385
        %2387 = vdwg.mxu0
        %v2388 = vadd.f32 %v2132, %v2377
        %v2389 = vadd.f32 %v2133, %v2380
        %v2390 = vadd.f32 %v2134, %v2383
        %v2391 = vadd.f32 %v2135, %v2386
        %v2392 = vld [vmem:[%s3] sm:$0x1]
        %v2394 = vperm.slane %v2392, 0
        %v2396 = vadd.f32 %v2388, %v2394
        %v2397 = vadd.f32 %v2389, %v2394
        %v2398 = vadd.f32 %v2390, %v2394
        %v2399 = vadd.f32 %v2391, %v2394
        %2400 = vst.msk [vmem:[%s250] sm:$0xff] %vm271, %v2396
        %2401 = vst.msk [vmem:[%s250 + $0x8] sm:$0xff] %vm271, %v2397
        %2402 = vst.msk [vmem:[%s250 + $0x10] sm:$0xff] %vm271, %v2398
        %2403 = vst.msk [vmem:[%s250 + $0x18] sm:$0xff] %vm271, %v2399
        %s2404 = sand.u32 %s119, 1
        %s2405 = scalar_lea.sflag [#allocation4], %s2404
        %s2406 = sand.u32 %s119, 1
        %s2407 = smul.addr %s2406, 32
        %s2408 = scalar_lea.vmem [#allocation8], %s2407
        // Predicated region
        $region49: #{attention_forward.1} parent=35 // pred_check
          %p2409 = pneg %p129
        $region50: #{attention_forward.1} parent=35 // pred_check_branch
          %2411 = sbr.rel (%p2409) target = $region52
        $region51: #{attention_forward.1} parent=35 // pred_region
          %2413 = vsyncadd %s2405, 0
          %s2414 = smul.addr %s22, 4
          %s2415 = smul.addr %s2414, 8
          %s2416 = scalar_lea.hbm %s4, %s2415
          %s2417 = sshll.u32 %s2408, 4
          %s2418 = int_to_ptr.vmem [resolvable:$true] %s2417
          %s2419 = sshll.u32 %s2416, 4
          %s2420 = int_to_ptr.hbm [resolvable:$true] %s2419
          %2425 = dma.vmem_to_hbm [thread:$0]  %s2418, 512, %s2420, %s2405, 128, 128, 8
        $region52: #{attention_forward.1} parent=35 // pred_fallthru
          _
      $region36: #{attention_forward.1} parent=5 // pred_fallthru
        _
      %p2426 = scmp.le.s32.totalorder 2, %s17
      // Predicated region
      $region53: #{attention_forward.1} parent=5 // pred_check
        %p2427 = pneg %p2426
      $region54: #{attention_forward.1} parent=5 // pred_check_branch
        %2429 = sbr.rel (%p2427) target = $region56
      $region55: #{attention_forward.1} parent=5 // pred_region
        %s2430 = ssub.s32 %s17, 2
        // Predicated region
        $region57: #{attention_forward.1} parent=55 // pred_check
          %p2431 = pneg %p135
        $region58: #{attention_forward.1} parent=55 // pred_check_branch
          %2433 = sbr.rel (%p2431) target = $region60
        $region59: #{attention_forward.1} parent=55 // pred_region
          %s2434 = sand.u32 %s120, 1
          %s2435 = scalar_lea.sflag [#allocation4], %s2434
          %s2436 = sand.u32 %s120, 1
          %s2437 = smul.addr %s2436, 32
          %s2438 = scalar_lea.vmem [#allocation8], %s2437
          %2440 = dma.done %s2435, 512
        $region60: #{attention_forward.1} parent=55 // pred_fallthru
          _
      $region56: #{attention_forward.1} parent=5 // pred_fallthru
        _
    $region6: #{attention_forward.1} parent=1 // loop_footer
      %s21 = sadd.s32 1, %s17
    $region7: #{attention_forward.1} parent=1 // loop_footer_branch
      %16 = sbr.rel target = $region3
    $region8: #{attention_forward.1} parent=1 // loop_exit
      _
    %2441 = vsyncpa [#allocation3], 1
    %s2442 = scalar_lea.sflag [#allocation3], 1
    %2443 = vsyncpa %s2442, 1
    %2444 = vsyncpa [#allocation6], 1
    %2445 = vsyncpa [#allocation4], 1
    %s2446 = scalar_lea.sflag [#allocation4], 1
    %2447 = vsyncpa %s2446, 1

</llo_original>
